<compile_context>
chip_gen: v6e
topology: v6e:2x2x1
jax: 0.10.0
libtpu: 0.0.40
codegen_flags: <defaults>
</compile_context>

<pallas_src>
import functools

import jax
import jax.numpy as jnp
from jax.experimental import pallas as pl
from jax.experimental.pallas import tpu as pltpu

EPS = 1e-5  # BatchNorm2d default eps


def _band_weights(w, W):
    """w: (3, 3, Cin, Cout) HWIO conv weight -> (3, W*Cin, W*Cout).

    out[dy, ji*Cin + ci, jo*Cout + co] = w[dy, ji - jo + 1, ci, co] when
    0 <= ji - jo + 1 < 3, else 0, so a (N*H, W*Cin) @ (W*Cin, W*Cout) matmul
    per dy realizes the 3x3 conv (zero padding along W is absorbed by the
    zero blocks of the banded matrix)."""
    ks, _, Cin, Cout = w.shape
    ji = jnp.arange(W)[:, None]
    jo = jnp.arange(W)[None, :]
    dx = ji - jo + 1                                   # (W, W)
    valid = (dx >= 0) & (dx < ks)
    dx_safe = jnp.clip(dx, 0, ks - 1)
    bands = []
    for dy in range(ks):
        blocks = w[dy][dx_safe]                        # (W, W, Cin, Cout)
        blocks = jnp.where(valid[:, :, None, None], blocks, 0.0)
        bands.append(
            jnp.transpose(blocks, (0, 2, 1, 3)).reshape(W * Cin, W * Cout))
    return jnp.stack(bands, axis=0)


def _unet_block_kernel(xpad_ref, w1_ref, w2_ref, bn_ref, o_ref, *,
                       N, H, W, Cout):
    WCout = W * Cout
    inv_cnt = 1.0 / float(N * H * W)

    # "Same channel" 0/1 matrix over the fused (W*Cout) lane axis; used to
    # gather per-channel sums and broadcast them back to every lane.
    li = jax.lax.broadcasted_iota(jnp.int32, (WCout, WCout), 0)
    lj = jax.lax.broadcasted_iota(jnp.int32, (WCout, WCout), 1)
    A = ((li % Cout) == (lj % Cout)).astype(jnp.float32)

    def conv3(xp, w_ref):
        # xp: (N, H+2, K) H-padded activations (W*C fused on lanes)
        k = xp.shape[-1]
        acc = jnp.dot(xp[:, 0:H, :].reshape(N * H, k), w_ref[0],
                      preferred_element_type=jnp.float32)
        for dy in (1, 2):
            acc = acc + jnp.dot(xp[:, dy:dy + H, :].reshape(N * H, k),
                                w_ref[dy],
                                preferred_element_type=jnp.float32)
        return acc                                     # (N*H, W*Cout)

    def bn_relu(y, gamma_lane, beta_lane):
        # Train-mode BatchNorm2d (biased batch stats) folded to scale/shift.
        s = jnp.sum(y, axis=0, keepdims=True)                        # (1, WCout)
        mean = jnp.dot(s, A, preferred_element_type=jnp.float32) * inv_cnt
        d = y - mean                                   # two-pass variance
        ss = jnp.sum(d * d, axis=0, keepdims=True)
        var = jnp.dot(ss, A, preferred_element_type=jnp.float32) * inv_cnt
        scale = gamma_lane * jax.lax.rsqrt(var + EPS)
        shift = beta_lane - mean * scale
        return jnp.maximum(y * scale + shift, 0.0)

    # ---- block 1: conv -> BN -> ReLU ----
    y1 = conv3(xpad_ref[...], w1_ref)
    y1 = bn_relu(y1, bn_ref[0:1, :], bn_ref[1:2, :])

    # ---- block 2: zero-pad along H only (W padding lives in the banded W2) --
    zrow = jnp.zeros((N, 1, WCout), jnp.float32)
    y1p = jnp.concatenate([zrow, y1.reshape(N, H, WCout), zrow], axis=1)
    y2 = conv3(y1p, w2_ref)
    y2 = bn_relu(y2, bn_ref[2:3, :], bn_ref[3:4, :])

    o_ref[...] = y2.reshape(N, H, WCout).astype(o_ref.dtype)   # full-lane store


def init_params(key, in_chs, out_chs, ks=3):
    """Mirrors PyTorch defaults: Conv2d weight ~ U(+-1/sqrt(fan_in)) (HWIO),
    BatchNorm2d gamma=1 / beta=0.  Conv biases are omitted: with train-mode
    BatchNorm immediately after the conv, a per-channel bias is exactly
    cancelled by the mean subtraction (dead parameters)."""
    k1, k2 = jax.random.split(key)
    b1 = 1.0 / (in_chs * ks * ks) ** 0.5
    b2 = 1.0 / (out_chs * ks * ks) ** 0.5
    w1 = jax.random.uniform(k1, (ks, ks, in_chs, out_chs), jnp.float32, -b1, b1)
    w2 = jax.random.uniform(k2, (ks, ks, out_chs, out_chs), jnp.float32, -b2, b2)
    g1 = jnp.ones((out_chs,), jnp.float32)
    be1 = jnp.zeros((out_chs,), jnp.float32)
    g2 = jnp.ones((out_chs,), jnp.float32)
    be2 = jnp.zeros((out_chs,), jnp.float32)
    return (w1, g1, be1, w2, g2, be2)


@jax.jit
def unet_block(x_nchw, params):
    N, Cin, H, W = x_nchw.shape
    w1, g1, be1, w2, g2, be2 = params
    Cout = w1.shape[-1]
    WCin, WCout = W * Cin, W * Cout

    # NCHW -> NHWC, fuse (W, C) onto the lane axis, zero-pad H by 1 each side.
    x_fused = jnp.transpose(x_nchw, (0, 2, 3, 1)).astype(jnp.float32)
    x_fused = x_fused.reshape(N, H, WCin)
    xpad = jnp.pad(x_fused, ((0, 0), (1, 1), (0, 0)))

    w1b = _band_weights(w1.astype(jnp.float32), W)     # (3, W*Cin,  W*Cout)
    w2b = _band_weights(w2.astype(jnp.float32), W)     # (3, W*Cout, W*Cout)

    # Pack BN params into a single input, pre-tiled to the fused lane width.
    bn = jnp.stack([jnp.tile(g1, W), jnp.tile(be1, W),
                    jnp.tile(g2, W), jnp.tile(be2, W)]).astype(jnp.float32)

    kernel = functools.partial(_unet_block_kernel, N=N, H=H, W=W, Cout=Cout)
    out = pl.pallas_call(
        kernel,
        out_shape=jax.ShapeDtypeStruct((N, H, WCout), jnp.float32),
        in_specs=[pl.BlockSpec(memory_space=pltpu.MemorySpace.VMEM)] * 4,
        out_specs=pl.BlockSpec(memory_space=pltpu.MemorySpace.VMEM),
    )(xpad, w1b, w2b, bn)

    # (N, H, W*Cout) -> (N, H, W, Cout) -> NCHW
    return jnp.transpose(out.reshape(N, H, W, Cout), (0, 3, 1, 2))


def _reference(x_nchw, params):
    """Pure-JAX (XLA) reference matching the PyTorch module in train mode."""
    w1, g1, be1, w2, g2, be2 = params

    def block(x, w, g, b):
        y = jax.lax.conv_general_dilated(
            x.astype(jnp.float32), w, window_strides=(1, 1),
            padding=((1, 1), (1, 1)),
            dimension_numbers=("NCHW", "HWIO", "NCHW"))
        mean = jnp.mean(y, axis=(0, 2, 3), keepdims=True)
        var = jnp.mean((y - mean) ** 2, axis=(0, 2, 3), keepdims=True)
        yn = (y - mean) * jax.lax.rsqrt(var + EPS)
        yn = yn * g.reshape(1, -1, 1, 1) + b.reshape(1, -1, 1, 1)
        return jnp.maximum(yn, 0.0)

    return block(block(x_nchw, w1, g1, be1), w2, g2, be2)


if __name__ == "__main__":
    key = jax.random.PRNGKey(0)
    kx, kp = jax.random.split(key)

    N, Cin, Cout, H, W = 2, 4, 8, 16, 16
    x = jax.random.normal(kx, (N, Cin, H, W), jnp.float32)
    params = init_params(kp, Cin, Cout)

    out = jax.block_until_ready(unet_block(x, params))
    assert out.shape == (N, Cout, H, W), out.shape
    assert bool(jnp.all(jnp.isfinite(out)))
    assert bool(jnp.all(out >= 0.0))  # ends with ReLU

    ref = jax.block_until_ready(_reference(x, params))
    assert bool(jnp.allclose(out, ref, rtol=1e-4, atol=1e-4)), (
        float(jnp.max(jnp.abs(out - ref))))

    print("KERNEL_OK")
</pallas_src>

<mosaic_0001>
module attributes {stable_mosaic.version = 11 : i64} {
  func.func @_unet_block_kernel(%arg0: memref<2x18x64xf32, #tpu.memory_space<vmem>>, %arg1: memref<3x64x128xf32, #tpu.memory_space<vmem>>, %arg2: memref<3x128x128xf32, #tpu.memory_space<vmem>>, %arg3: memref<4x128xf32, #tpu.memory_space<vmem>>, %arg4: memref<2x16x128xf32, #tpu.memory_space<vmem>>) attributes {dimension_semantics = [], scalar_prefetch = 0 : i64, scratch_operands = 0 : i64, tpu.core_type = #tpu.core_type<tc>} {
    %0 = tpu.iota {dimensions = array<i32: 0>} : vector<128x128xi32>
    %1 = tpu.iota {dimensions = array<i32: 1>} : vector<128x128xi32>
    %c8_i32 = arith.constant 8 : i32
    %c0_i32 = arith.constant 0 : i32
    %2 = arith.cmpi eq, %c8_i32, %c0_i32 : i32
    %c1_i32 = arith.constant 1 : i32
    %3 = arith.select %2, %c1_i32, %c8_i32 : i32
    %4 = vector.broadcast %3 : i32 to vector<128x128xi32>
    %5 = arith.remsi %0, %4 : vector<128x128xi32>
    %c0_i32_0 = arith.constant 0 : i32
    %6 = vector.broadcast %c0_i32_0 : i32 to vector<128x128xi32>
    %7 = arith.cmpi ne, %5, %6 : vector<128x128xi32>
    %c0_i32_1 = arith.constant 0 : i32
    %8 = vector.broadcast %c0_i32_1 : i32 to vector<128x128xi32>
    %9 = arith.cmpi slt, %5, %8 : vector<128x128xi32>
    %c0_i32_2 = arith.constant 0 : i32
    %10 = arith.cmpi slt, %3, %c0_i32_2 : i32
    %11 = vector.broadcast %10 : i1 to vector<128x128xi1>
    %12 = vector.broadcast %11 : vector<128x128xi1> to vector<128x128xi1>
    %13 = arith.xori %9, %12 : vector<128x128xi1>
    %14 = arith.andi %13, %7 : vector<128x128xi1>
    %15 = vector.broadcast %3 : i32 to vector<128x128xi32>
    %16 = arith.addi %5, %15 : vector<128x128xi32>
    %17 = arith.select %14, %16, %5 : vector<128x128xi1>, vector<128x128xi32>
    %c8_i32_3 = arith.constant 8 : i32
    %c0_i32_4 = arith.constant 0 : i32
    %18 = arith.cmpi eq, %c8_i32_3, %c0_i32_4 : i32
    %c1_i32_5 = arith.constant 1 : i32
    %19 = arith.select %18, %c1_i32_5, %c8_i32_3 : i32
    %20 = vector.broadcast %19 : i32 to vector<128x128xi32>
    %21 = arith.remsi %1, %20 : vector<128x128xi32>
    %c0_i32_6 = arith.constant 0 : i32
    %22 = vector.broadcast %c0_i32_6 : i32 to vector<128x128xi32>
    %23 = arith.cmpi ne, %21, %22 : vector<128x128xi32>
    %c0_i32_7 = arith.constant 0 : i32
    %24 = vector.broadcast %c0_i32_7 : i32 to vector<128x128xi32>
    %25 = arith.cmpi slt, %21, %24 : vector<128x128xi32>
    %c0_i32_8 = arith.constant 0 : i32
    %26 = arith.cmpi slt, %19, %c0_i32_8 : i32
    %27 = vector.broadcast %26 : i1 to vector<128x128xi1>
    %28 = vector.broadcast %27 : vector<128x128xi1> to vector<128x128xi1>
    %29 = arith.xori %25, %28 : vector<128x128xi1>
    %30 = arith.andi %29, %23 : vector<128x128xi1>
    %31 = vector.broadcast %19 : i32 to vector<128x128xi32>
    %32 = arith.addi %21, %31 : vector<128x128xi32>
    %33 = arith.select %30, %32, %21 : vector<128x128xi1>, vector<128x128xi32>
    %34 = arith.cmpi eq, %17, %33 : vector<128x128xi32>
    %35 = arith.extui %34 : vector<128x128xi1> to vector<128x128xi32>
    %36 = arith.sitofp %35 : vector<128x128xi32> to vector<128x128xf32>
    %c0 = arith.constant 0 : index
    %c0_9 = arith.constant 0 : index
    %c0_10 = arith.constant 0 : index
    %37 = vector.load %arg0[%c0, %c0_9, %c0_10] : memref<2x18x64xf32, #tpu.memory_space<vmem>>, vector<2x18x64xf32>
    %38 = vector.extract_strided_slice %37 {offsets = [0, 0, 0], sizes = [2, 16, 64], strides = [1, 1, 1]} : vector<2x18x64xf32> to vector<2x16x64xf32>
    %39 = vector.shape_cast %38 : vector<2x16x64xf32> to vector<32x64xf32>
    %c0_11 = arith.constant 0 : index
    %c0_12 = arith.constant 0 : index
    %c0_13 = arith.constant 0 : index
    %40 = vector.load %arg1[%c0_11, %c0_12, %c0_13] : memref<3x64x128xf32, #tpu.memory_space<vmem>>, vector<1x64x128xf32>
    %41 = vector.shape_cast %40 : vector<1x64x128xf32> to vector<64x128xf32>
    %cst = arith.constant dense<0.000000e+00> : vector<32x128xf32>
    %42 = tpu.matmul %39, %41, %cst {dimension_numbers = #tpu.dot_dimension_numbers<[1], [0], [0], [1], [0, 0, 1, 1], [], []>} : vector<32x64xf32>, vector<64x128xf32>, vector<32x128xf32> -> vector<32x128xf32>
    %43 = vector.extract_strided_slice %37 {offsets = [0, 1, 0], sizes = [2, 16, 64], strides = [1, 1, 1]} : vector<2x18x64xf32> to vector<2x16x64xf32>
    %44 = vector.shape_cast %43 : vector<2x16x64xf32> to vector<32x64xf32>
    %c1 = arith.constant 1 : index
    %c0_14 = arith.constant 0 : index
    %c0_15 = arith.constant 0 : index
    %45 = vector.load %arg1[%c1, %c0_14, %c0_15] : memref<3x64x128xf32, #tpu.memory_space<vmem>>, vector<1x64x128xf32>
    %46 = vector.shape_cast %45 : vector<1x64x128xf32> to vector<64x128xf32>
    %cst_16 = arith.constant dense<0.000000e+00> : vector<32x128xf32>
    %47 = tpu.matmul %44, %46, %cst_16 {dimension_numbers = #tpu.dot_dimension_numbers<[1], [0], [0], [1], [0, 0, 1, 1], [], []>} : vector<32x64xf32>, vector<64x128xf32>, vector<32x128xf32> -> vector<32x128xf32>
    %48 = arith.addf %42, %47 : vector<32x128xf32>
    %49 = vector.extract_strided_slice %37 {offsets = [0, 2, 0], sizes = [2, 16, 64], strides = [1, 1, 1]} : vector<2x18x64xf32> to vector<2x16x64xf32>
    %50 = vector.shape_cast %49 : vector<2x16x64xf32> to vector<32x64xf32>
    %c2 = arith.constant 2 : index
    %c0_17 = arith.constant 0 : index
    %c0_18 = arith.constant 0 : index
    %51 = vector.load %arg1[%c2, %c0_17, %c0_18] : memref<3x64x128xf32, #tpu.memory_space<vmem>>, vector<1x64x128xf32>
    %52 = vector.shape_cast %51 : vector<1x64x128xf32> to vector<64x128xf32>
    %cst_19 = arith.constant dense<0.000000e+00> : vector<32x128xf32>
    %53 = tpu.matmul %50, %52, %cst_19 {dimension_numbers = #tpu.dot_dimension_numbers<[1], [0], [0], [1], [0, 0, 1, 1], [], []>} : vector<32x64xf32>, vector<64x128xf32>, vector<32x128xf32> -> vector<32x128xf32>
    %54 = arith.addf %48, %53 : vector<32x128xf32>
    %c0_20 = arith.constant 0 : index
    %c0_21 = arith.constant 0 : index
    %55 = vector.load %arg3[%c0_20, %c0_21] : memref<4x128xf32, #tpu.memory_space<vmem>>, vector<1x128xf32>
    %c1_22 = arith.constant 1 : index
    %c0_23 = arith.constant 0 : index
    %56 = vector.load %arg3[%c1_22, %c0_23] : memref<4x128xf32, #tpu.memory_space<vmem>>, vector<1x128xf32>
    %cst_24 = arith.constant dense<0.000000e+00> : vector<128xf32>
    %57 = vector.multi_reduction <add>, %54, %cst_24 [0] : vector<32x128xf32> to vector<128xf32>
    %58 = vector.shape_cast %57 : vector<128xf32> to vector<1x128xf32>
    %cst_25 = arith.constant dense<0.000000e+00> : vector<1x128xf32>
    %59 = tpu.matmul %58, %36, %cst_25 {dimension_numbers = #tpu.dot_dimension_numbers<[1], [0], [0], [1], [0, 0, 1, 1], [], []>} : vector<1x128xf32>, vector<128x128xf32>, vector<1x128xf32> -> vector<1x128xf32>
    %cst_26 = arith.constant 0.001953125 : f32
    %60 = vector.broadcast %cst_26 : f32 to vector<1x128xf32>
    %61 = arith.mulf %59, %60 : vector<1x128xf32>
    %62 = vector.broadcast %61 : vector<1x128xf32> to vector<32x128xf32>
    %63 = arith.subf %54, %62 : vector<32x128xf32>
    %64 = arith.mulf %63, %63 : vector<32x128xf32>
    %cst_27 = arith.constant dense<0.000000e+00> : vector<128xf32>
    %65 = vector.multi_reduction <add>, %64, %cst_27 [0] : vector<32x128xf32> to vector<128xf32>
    %66 = vector.shape_cast %65 : vector<128xf32> to vector<1x128xf32>
    %cst_28 = arith.constant dense<0.000000e+00> : vector<1x128xf32>
    %67 = tpu.matmul %66, %36, %cst_28 {dimension_numbers = #tpu.dot_dimension_numbers<[1], [0], [0], [1], [0, 0, 1, 1], [], []>} : vector<1x128xf32>, vector<128x128xf32>, vector<1x128xf32> -> vector<1x128xf32>
    %cst_29 = arith.constant 0.001953125 : f32
    %68 = vector.broadcast %cst_29 : f32 to vector<1x128xf32>
    %69 = arith.mulf %67, %68 : vector<1x128xf32>
    %cst_30 = arith.constant 9.99999974E-6 : f32
    %70 = vector.broadcast %cst_30 : f32 to vector<1x128xf32>
    %71 = arith.addf %69, %70 : vector<1x128xf32>
    %72 = math.rsqrt %71 : vector<1x128xf32>
    %73 = arith.mulf %55, %72 : vector<1x128xf32>
    %74 = arith.mulf %61, %73 : vector<1x128xf32>
    %75 = arith.subf %56, %74 : vector<1x128xf32>
    %76 = vector.broadcast %73 : vector<1x128xf32> to vector<32x128xf32>
    %77 = arith.mulf %54, %76 : vector<32x128xf32>
    %78 = vector.broadcast %75 : vector<1x128xf32> to vector<32x128xf32>
    %79 = arith.addf %77, %78 : vector<32x128xf32>
    %cst_31 = arith.constant 0.000000e+00 : f32
    %80 = vector.broadcast %cst_31 : f32 to vector<32x128xf32>
    %81 = arith.maximumf %79, %80 : vector<32x128xf32>
    %cst_32 = arith.constant 0.000000e+00 : f32
    %82 = vector.broadcast %cst_32 : f32 to vector<2x1x128xf32>
    %83 = vector.shape_cast %81 : vector<32x128xf32> to vector<2x16x128xf32>
    %84 = tpu.concatenate %82, %83, %82 in 1 : vector<2x1x128xf32>, vector<2x16x128xf32>, vector<2x1x128xf32> -> vector<2x18x128xf32>
    %85 = vector.extract_strided_slice %84 {offsets = [0, 0, 0], sizes = [2, 16, 128], strides = [1, 1, 1]} : vector<2x18x128xf32> to vector<2x16x128xf32>
    %86 = vector.shape_cast %85 : vector<2x16x128xf32> to vector<32x128xf32>
    %c0_33 = arith.constant 0 : index
    %c0_34 = arith.constant 0 : index
    %c0_35 = arith.constant 0 : index
    %87 = vector.load %arg2[%c0_33, %c0_34, %c0_35] : memref<3x128x128xf32, #tpu.memory_space<vmem>>, vector<1x128x128xf32>
    %88 = vector.shape_cast %87 : vector<1x128x128xf32> to vector<128x128xf32>
    %cst_36 = arith.constant dense<0.000000e+00> : vector<32x128xf32>
    %89 = tpu.matmul %86, %88, %cst_36 {dimension_numbers = #tpu.dot_dimension_numbers<[1], [0], [0], [1], [0, 0, 1, 1], [], []>} : vector<32x128xf32>, vector<128x128xf32>, vector<32x128xf32> -> vector<32x128xf32>
    %90 = vector.extract_strided_slice %84 {offsets = [0, 1, 0], sizes = [2, 16, 128], strides = [1, 1, 1]} : vector<2x18x128xf32> to vector<2x16x128xf32>
    %91 = vector.shape_cast %90 : vector<2x16x128xf32> to vector<32x128xf32>
    %c1_37 = arith.constant 1 : index
    %c0_38 = arith.constant 0 : index
    %c0_39 = arith.constant 0 : index
    %92 = vector.load %arg2[%c1_37, %c0_38, %c0_39] : memref<3x128x128xf32, #tpu.memory_space<vmem>>, vector<1x128x128xf32>
    %93 = vector.shape_cast %92 : vector<1x128x128xf32> to vector<128x128xf32>
    %cst_40 = arith.constant dense<0.000000e+00> : vector<32x128xf32>
    %94 = tpu.matmul %91, %93, %cst_40 {dimension_numbers = #tpu.dot_dimension_numbers<[1], [0], [0], [1], [0, 0, 1, 1], [], []>} : vector<32x128xf32>, vector<128x128xf32>, vector<32x128xf32> -> vector<32x128xf32>
    %95 = arith.addf %89, %94 : vector<32x128xf32>
    %96 = vector.extract_strided_slice %84 {offsets = [0, 2, 0], sizes = [2, 16, 128], strides = [1, 1, 1]} : vector<2x18x128xf32> to vector<2x16x128xf32>
    %97 = vector.shape_cast %96 : vector<2x16x128xf32> to vector<32x128xf32>
    %c2_41 = arith.constant 2 : index
    %c0_42 = arith.constant 0 : index
    %c0_43 = arith.constant 0 : index
    %98 = vector.load %arg2[%c2_41, %c0_42, %c0_43] : memref<3x128x128xf32, #tpu.memory_space<vmem>>, vector<1x128x128xf32>
    %99 = vector.shape_cast %98 : vector<1x128x128xf32> to vector<128x128xf32>
    %cst_44 = arith.constant dense<0.000000e+00> : vector<32x128xf32>
    %100 = tpu.matmul %97, %99, %cst_44 {dimension_numbers = #tpu.dot_dimension_numbers<[1], [0], [0], [1], [0, 0, 1, 1], [], []>} : vector<32x128xf32>, vector<128x128xf32>, vector<32x128xf32> -> vector<32x128xf32>
    %101 = arith.addf %95, %100 : vector<32x128xf32>
    %c2_45 = arith.constant 2 : index
    %c0_46 = arith.constant 0 : index
    %102 = vector.load %arg3[%c2_45, %c0_46] : memref<4x128xf32, #tpu.memory_space<vmem>>, vector<1x128xf32>
    %c3 = arith.constant 3 : index
    %c0_47 = arith.constant 0 : index
    %103 = vector.load %arg3[%c3, %c0_47] : memref<4x128xf32, #tpu.memory_space<vmem>>, vector<1x128xf32>
    %cst_48 = arith.constant dense<0.000000e+00> : vector<128xf32>
    %104 = vector.multi_reduction <add>, %101, %cst_48 [0] : vector<32x128xf32> to vector<128xf32>
    %105 = vector.shape_cast %104 : vector<128xf32> to vector<1x128xf32>
    %cst_49 = arith.constant dense<0.000000e+00> : vector<1x128xf32>
    %106 = tpu.matmul %105, %36, %cst_49 {dimension_numbers = #tpu.dot_dimension_numbers<[1], [0], [0], [1], [0, 0, 1, 1], [], []>} : vector<1x128xf32>, vector<128x128xf32>, vector<1x128xf32> -> vector<1x128xf32>
    %cst_50 = arith.constant 0.001953125 : f32
    %107 = vector.broadcast %cst_50 : f32 to vector<1x128xf32>
    %108 = arith.mulf %106, %107 : vector<1x128xf32>
    %109 = vector.broadcast %108 : vector<1x128xf32> to vector<32x128xf32>
    %110 = arith.subf %101, %109 : vector<32x128xf32>
    %111 = arith.mulf %110, %110 : vector<32x128xf32>
    %cst_51 = arith.constant dense<0.000000e+00> : vector<128xf32>
    %112 = vector.multi_reduction <add>, %111, %cst_51 [0] : vector<32x128xf32> to vector<128xf32>
    %113 = vector.shape_cast %112 : vector<128xf32> to vector<1x128xf32>
    %cst_52 = arith.constant dense<0.000000e+00> : vector<1x128xf32>
    %114 = tpu.matmul %113, %36, %cst_52 {dimension_numbers = #tpu.dot_dimension_numbers<[1], [0], [0], [1], [0, 0, 1, 1], [], []>} : vector<1x128xf32>, vector<128x128xf32>, vector<1x128xf32> -> vector<1x128xf32>
    %cst_53 = arith.constant 0.001953125 : f32
    %115 = vector.broadcast %cst_53 : f32 to vector<1x128xf32>
    %116 = arith.mulf %114, %115 : vector<1x128xf32>
    %cst_54 = arith.constant 9.99999974E-6 : f32
    %117 = vector.broadcast %cst_54 : f32 to vector<1x128xf32>
    %118 = arith.addf %116, %117 : vector<1x128xf32>
    %119 = math.rsqrt %118 : vector<1x128xf32>
    %120 = arith.mulf %102, %119 : vector<1x128xf32>
    %121 = arith.mulf %108, %120 : vector<1x128xf32>
    %122 = arith.subf %103, %121 : vector<1x128xf32>
    %123 = vector.broadcast %120 : vector<1x128xf32> to vector<32x128xf32>
    %124 = arith.mulf %101, %123 : vector<32x128xf32>
    %125 = vector.broadcast %122 : vector<1x128xf32> to vector<32x128xf32>
    %126 = arith.addf %124, %125 : vector<32x128xf32>
    %cst_55 = arith.constant 0.000000e+00 : f32
    %127 = vector.broadcast %cst_55 : f32 to vector<32x128xf32>
    %128 = arith.maximumf %126, %127 : vector<32x128xf32>
    %129 = vector.shape_cast %128 : vector<32x128xf32> to vector<2x16x128xf32>
    %c0_56 = arith.constant 0 : index
    %c0_57 = arith.constant 0 : index
    %c0_58 = arith.constant 0 : index
    %130 = vector.load %arg4[%c0_56, %c0_57, %c0_58] : memref<2x16x128xf32, #tpu.memory_space<vmem>>, vector<2x16x128xf32>
    tpu.vector_store %arg4[%c0_56, %c0_57, %c0_58], %129 {strides = array<i32>} : memref<2x16x128xf32, #tpu.memory_space<vmem>>, vector<2x16x128xf32>,
    return
  }
}

</mosaic_0001>

<llo_original>
// kernel: tile.23
$region0: #{tile.23}
  #allocation0 [shape = 's32[1]{0}', space=sflag, size = 0x4, scoped, tag = 'scoped memory for tile.23']
  %s0 = inlined_call_operand.vmem [shape: f32[8], index: 0, kind: input, shape index: {}]
  %s1 = inlined_call_operand.vmem [shape: f32[16,8], index: 1, kind: output, shape index: {}]
  // Predicated region
  $region2: #{tile.23} parent=0 // pred_check
    _
  $region3: #{tile.23} parent=0 // pred_check_branch
    %3 = sbr.rel (0) target = $region5
  $region4: #{tile.23} parent=0 // pred_region
    _
  $region5: #{tile.23} parent=0 // pred_fallthru
    _
  %v4 = vld [vmem:[%s0] ss:$0 sm:$0xff]
  %5 = vst [vmem:[%s1] sm:$0xff] %v4
  %s6 = scalar_lea.vmem %s1, 8
  %7 = vst [vmem:[%s6] sm:$0xff] %v4

// kernel: tile.36
$region0: #{tile.36}
  %s0 = inlined_call_operand.vmem [shape: f32[16,8], index: 0, kind: input, shape index: {}]
  %s1 = inlined_call_operand.vmem [shape: f32[1,128], index: 1, kind: output, shape index: {}]
  $region1: #{tile.36} parent=0
    #allocation0 [shape = 'u8[4096]{0}', space=vmem, size = 0x1000, scoped, tag = 'scoped mem for output reshape']
    %v2 = vld [vmem:[%s0] sm:$0x1]
    %vm3 = vcmask 64512
    %4 = vst.msk [vmem:[#allocation0] sm:$0x1] %vm3, %v2
    %s5 = scalar_lea.vmem %s0, 15
    %v6 = vld [vmem:[%s5] sm:$0x1]
    %7 = vrot.lane.b32.xlu0 %v6, 120
    %v8 = vpop.permute.xlu0 %7
    %vm9 = vcmask 1048512
    %10 = vst.msk [vmem:[#allocation0] sm:$0x1] %vm9, %v8
    %s11 = scalar_lea.vmem %s0, 14
    %v12 = vld [vmem:[%s11] sm:$0x1]
    %13 = vrot.lane.b32.xlu0 %v12, 112
    %v14 = vpop.permute.xlu0 %13
    %vm15 = vcmask 982912
    %16 = vst.msk [vmem:[#allocation0] sm:$0x1] %vm15, %v14
    %s17 = scalar_lea.vmem %s0, 13
    %v18 = vld [vmem:[%s17] sm:$0x1]
    %19 = vrot.lane.b32.xlu0 %v18, 104
    %v20 = vpop.permute.xlu0 %19
    %vm21 = vcmask 917312
    %22 = vst.msk [vmem:[#allocation0] sm:$0x1] %vm21, %v20
    %s23 = scalar_lea.vmem %s0, 12
    %v24 = vld [vmem:[%s23] sm:$0x1]
    %25 = vrot.lane.b32.xlu0 %v24, 96
    %v26 = vpop.permute.xlu0 %25
    %vm27 = vcmask 851712
    %28 = vst.msk [vmem:[#allocation0] sm:$0x1] %vm27, %v26
    %s29 = scalar_lea.vmem %s0, 11
    %v30 = vld [vmem:[%s29] sm:$0x1]
    %31 = vrot.lane.b32.xlu0 %v30, 88
    %v32 = vpop.permute.xlu0 %31
    %vm33 = vcmask 786112
    %34 = vst.msk [vmem:[#allocation0] sm:$0x1] %vm33, %v32
    %s35 = scalar_lea.vmem %s0, 10
    %v36 = vld [vmem:[%s35] sm:$0x1]
    %37 = vrot.lane.b32.xlu0 %v36, 80
    %v38 = vpop.permute.xlu0 %37
    %vm39 = vcmask 720512
    %40 = vst.msk [vmem:[#allocation0] sm:$0x1] %vm39, %v38
    %s41 = scalar_lea.vmem %s0, 9
    %v42 = vld [vmem:[%s41] sm:$0x1]
    %43 = vrot.lane.b32.xlu0 %v42, 72
    %v44 = vpop.permute.xlu0 %43
    %vm45 = vcmask 654912
    %46 = vst.msk [vmem:[#allocation0] sm:$0x1] %vm45, %v44
    %s47 = scalar_lea.vmem %s0, 8
    %v48 = vld [vmem:[%s47] sm:$0x1]
    %49 = vrot.lane.b32.xlu0 %v48, 64
    %v50 = vpop.permute.xlu0 %49
    %vm51 = vcmask 589312
    %52 = vst.msk [vmem:[#allocation0] sm:$0x1] %vm51, %v50
    %s53 = scalar_lea.vmem %s0, 7
    %v54 = vld [vmem:[%s53] sm:$0x1]
    %55 = vrot.lane.b32.xlu0 %v54, 56
    %v56 = vpop.permute.xlu0 %55
    %vm57 = vcmask 523712
    %58 = vst.msk [vmem:[#allocation0] sm:$0x1] %vm57, %v56
    %s59 = scalar_lea.vmem %s0, 6
    %v60 = vld [vmem:[%s59] sm:$0x1]
    %61 = vrot.lane.b32.xlu0 %v60, 48
    %v62 = vpop.permute.xlu0 %61
    %vm63 = vcmask 458112
    %64 = vst.msk [vmem:[#allocation0] sm:$0x1] %vm63, %v62
    %s65 = scalar_lea.vmem %s0, 5
    %v66 = vld [vmem:[%s65] sm:$0x1]
    %67 = vrot.lane.b32.xlu0 %v66, 40
    %v68 = vpop.permute.xlu0 %67
    %vm69 = vcmask 392512
    %70 = vst.msk [vmem:[#allocation0] sm:$0x1] %vm69, %v68
    %s71 = scalar_lea.vmem %s0, 4
    %v72 = vld [vmem:[%s71] sm:$0x1]
    %73 = vrot.lane.b32.xlu0 %v72, 32
    %v74 = vpop.permute.xlu0 %73
    %vm75 = vcmask 326912
    %76 = vst.msk [vmem:[#allocation0] sm:$0x1] %vm75, %v74
    %s77 = scalar_lea.vmem %s0, 3
    %v78 = vld [vmem:[%s77] sm:$0x1]
    %79 = vrot.lane.b32.xlu0 %v78, 24
    %v80 = vpop.permute.xlu0 %79
    %vm81 = vcmask 261312
    %82 = vst.msk [vmem:[#allocation0] sm:$0x1] %vm81, %v80
    %s83 = scalar_lea.vmem %s0, 2
    %v84 = vld [vmem:[%s83] sm:$0x1]
    %85 = vrot.lane.b32.xlu0 %v84, 16
    %v86 = vpop.permute.xlu0 %85
    %vm87 = vcmask 195712
    %88 = vst.msk [vmem:[#allocation0] sm:$0x1] %vm87, %v86
    %s89 = scalar_lea.vmem %s0, 1
    %v90 = vld [vmem:[%s89] sm:$0x1]
    %91 = vrot.lane.b32.xlu0 %v90, 8
    %v92 = vpop.permute.xlu0 %91
    %vm93 = vcmask 130112
    %94 = vst.msk [vmem:[#allocation0] sm:$0x1] %vm93, %v92
    %s96 = sshll.u32 1, 1
    %s97 = ssub.s32 %s96, 1
    %v99 = vld [vmem:[#allocation0] sm:%s97]
    %s100 = sshll.u32 1, 1
    %s101 = ssub.s32 %s100, 1
    %102 = vst [vmem:[%s1] sm:%s101] %v99

// kernel: unet_block.1
$region0: #{unet_block.1}
  #allocation0 [shape = 'u32[]', space=smem, size = 0x4, offset = 0x4, fixed_abs, tag = 'smem constant byte address 0x4 - core index']
  #allocation1 [shape = 'u32[144,128]{1,0:T(1,128)}', space=vmem, size = 0x12000, scoped, tag = 'internal scratch']
  %s0 = inlined_call_operand.vmem [shape: f32[2,18,64], index: 0, kind: input, shape index: {}]
  %s1 = inlined_call_operand.vmem [shape: f32[3,64,128], index: 1, kind: input, shape index: {}]
  %s2 = inlined_call_operand.vmem [shape: f32[3,128,128], index: 2, kind: input, shape index: {}]
  %s3 = inlined_call_operand.vmem [shape: f32[4,128], index: 3, kind: input, shape index: {}]
  %s4 = inlined_call_operand.vmem [shape: f32[2,16,128], index: 4, kind: output, shape index: {}]
  %s5 = sld [smem:[#allocation0]]
  $region26: #{unet_block.1} parent=0
    _
  %s7 = ssub.s32 1, %s5
  %s8 = scalar_select 0, %s7, %s5
  // Predicated region
  $region2: #{unet_block.1} parent=0 // pred_check
    _
  $region3: #{unet_block.1} parent=0 // pred_check_branch
    %10 = sbr.rel (0) target = $region5
  $region4: #{unet_block.1} parent=0 // pred_region
    _
  $region5: #{unet_block.1} parent=0 // pred_fallthru
    _
  // Predicated region
  $region6: #{unet_block.1} parent=0 // pred_check
    _
  $region7: #{unet_block.1} parent=0 // pred_check_branch
    %12 = sbr.rel (0) target = $region9
  $region8: #{unet_block.1} parent=0 // pred_region
    _
  $region9: #{unet_block.1} parent=0 // pred_fallthru
    _
  // Predicated region
  $region10: #{unet_block.1} parent=0 // pred_check
    _
  $region11: #{unet_block.1} parent=0 // pred_check_branch
    %14 = sbr.rel (0) target = $region13
  $region12: #{unet_block.1} parent=0 // pred_region
    _
  $region13: #{unet_block.1} parent=0 // pred_fallthru
    _
  // Predicated region
  $region14: #{unet_block.1} parent=0 // pred_check
    _
  $region15: #{unet_block.1} parent=0 // pred_check_branch
    %16 = sbr.rel (0) target = $region17
  $region16: #{unet_block.1} parent=0 // pred_region
    _
  $region17: #{unet_block.1} parent=0 // pred_fallthru
    _
  %v17 = vlaneseq
  %v18 = vshrl.u32 %v17, 7
  %v19 = vadd.s32 %v18, 8
  %v20 = vadd.s32 %v18, 16
  %v21 = vadd.s32 %v18, 24
  %v22 = vadd.s32 %v18, 32
  %v23 = vadd.s32 %v18, 40
  %v24 = vadd.s32 %v18, 48
  %v25 = vadd.s32 %v18, 56
  %v26 = vadd.s32 %v18, 64
  %v27 = vadd.s32 %v18, 72
  %v28 = vadd.s32 %v18, 80
  %v29 = vadd.s32 %v18, 88
  %v30 = vadd.s32 %v18, 96
  %v31 = vadd.s32 %v18, 104
  %v32 = vadd.s32 %v18, 112
  %v33 = vadd.s32 %v18, 120
  %v34 = vlaneseq
  %v35 = vand.u32 %v34, 127
  %vm36 = vcmp.lt.s32.totalorder %v18, 0
  %v37 = vsub.s32 0, %v18
  %v38 = vsel %vm36, %v37, %v18
  %v39 = vshrl.u32 %v38, 3
  %v40 = vand.u32 %v38, 7
  %v41 = vsub.s32 0, %v40
  %v42 = vsel %vm36, %v41, %v40
  %vm43 = vcmp.lt.s32.totalorder %v19, 0
  %v44 = vsub.s32 0, %v19
  %v45 = vsel %vm43, %v44, %v19
  %v46 = vshrl.u32 %v45, 3
  %v47 = vand.u32 %v45, 7
  %v48 = vsub.s32 0, %v47
  %v49 = vsel %vm43, %v48, %v47
  %vm50 = vcmp.lt.s32.totalorder %v20, 0
  %v51 = vsub.s32 0, %v20
  %v52 = vsel %vm50, %v51, %v20
  %v53 = vshrl.u32 %v52, 3
  %v54 = vand.u32 %v52, 7
  %v55 = vsub.s32 0, %v54
  %v56 = vsel %vm50, %v55, %v54
  %vm57 = vcmp.lt.s32.totalorder %v21, 0
  %v58 = vsub.s32 0, %v21
  %v59 = vsel %vm57, %v58, %v21
  %v60 = vshrl.u32 %v59, 3
  %v61 = vand.u32 %v59, 7
  %v62 = vsub.s32 0, %v61
  %v63 = vsel %vm57, %v62, %v61
  %vm64 = vcmp.lt.s32.totalorder %v22, 0
  %v65 = vsub.s32 0, %v22
  %v66 = vsel %vm64, %v65, %v22
  %v67 = vshrl.u32 %v66, 3
  %v68 = vand.u32 %v66, 7
  %v69 = vsub.s32 0, %v68
  %v70 = vsel %vm64, %v69, %v68
  %vm71 = vcmp.lt.s32.totalorder %v23, 0
  %v72 = vsub.s32 0, %v23
  %v73 = vsel %vm71, %v72, %v23
  %v74 = vshrl.u32 %v73, 3
  %v75 = vand.u32 %v73, 7
  %v76 = vsub.s32 0, %v75
  %v77 = vsel %vm71, %v76, %v75
  %vm78 = vcmp.lt.s32.totalorder %v24, 0
  %v79 = vsub.s32 0, %v24
  %v80 = vsel %vm78, %v79, %v24
  %v81 = vshrl.u32 %v80, 3
  %v82 = vand.u32 %v80, 7
  %v83 = vsub.s32 0, %v82
  %v84 = vsel %vm78, %v83, %v82
  %vm85 = vcmp.lt.s32.totalorder %v25, 0
  %v86 = vsub.s32 0, %v25
  %v87 = vsel %vm85, %v86, %v25
  %v88 = vshrl.u32 %v87, 3
  %v89 = vand.u32 %v87, 7
  %v90 = vsub.s32 0, %v89
  %v91 = vsel %vm85, %v90, %v89
  %vm92 = vcmp.lt.s32.totalorder %v26, 0
  %v93 = vsub.s32 0, %v26
  %v94 = vsel %vm92, %v93, %v26
  %v95 = vshrl.u32 %v94, 3
  %v96 = vand.u32 %v94, 7
  %v97 = vsub.s32 0, %v96
  %v98 = vsel %vm92, %v97, %v96
  %vm99 = vcmp.lt.s32.totalorder %v27, 0
  %v100 = vsub.s32 0, %v27
  %v101 = vsel %vm99, %v100, %v27
  %v102 = vshrl.u32 %v101, 3
  %v103 = vand.u32 %v101, 7
  %v104 = vsub.s32 0, %v103
  %v105 = vsel %vm99, %v104, %v103
  %vm106 = vcmp.lt.s32.totalorder %v28, 0
  %v107 = vsub.s32 0, %v28
  %v108 = vsel %vm106, %v107, %v28
  %v109 = vshrl.u32 %v108, 3
  %v110 = vand.u32 %v108, 7
  %v111 = vsub.s32 0, %v110
  %v112 = vsel %vm106, %v111, %v110
  %vm113 = vcmp.lt.s32.totalorder %v29, 0
  %v114 = vsub.s32 0, %v29
  %v115 = vsel %vm113, %v114, %v29
  %v116 = vshrl.u32 %v115, 3
  %v117 = vand.u32 %v115, 7
  %v118 = vsub.s32 0, %v117
  %v119 = vsel %vm113, %v118, %v117
  %vm120 = vcmp.lt.s32.totalorder %v30, 0
  %v121 = vsub.s32 0, %v30
  %v122 = vsel %vm120, %v121, %v30
  %v123 = vshrl.u32 %v122, 3
  %v124 = vand.u32 %v122, 7
  %v125 = vsub.s32 0, %v124
  %v126 = vsel %vm120, %v125, %v124
  %vm127 = vcmp.lt.s32.totalorder %v31, 0
  %v128 = vsub.s32 0, %v31
  %v129 = vsel %vm127, %v128, %v31
  %v130 = vshrl.u32 %v129, 3
  %v131 = vand.u32 %v129, 7
  %v132 = vsub.s32 0, %v131
  %v133 = vsel %vm127, %v132, %v131
  %vm134 = vcmp.lt.s32.totalorder %v32, 0
  %v135 = vsub.s32 0, %v32
  %v136 = vsel %vm134, %v135, %v32
  %v137 = vshrl.u32 %v136, 3
  %v138 = vand.u32 %v136, 7
  %v139 = vsub.s32 0, %v138
  %v140 = vsel %vm134, %v139, %v138
  %vm141 = vcmp.lt.s32.totalorder %v33, 0
  %v142 = vsub.s32 0, %v33
  %v143 = vsel %vm141, %v142, %v33
  %v144 = vshrl.u32 %v143, 3
  %v145 = vand.u32 %v143, 7
  %v146 = vsub.s32 0, %v145
  %v147 = vsel %vm141, %v146, %v145
  %vm148 = vcmp.ne.s32.totalorder %v42, 0
  %vm149 = vcmp.ne.s32.totalorder %v49, 0
  %vm150 = vcmp.ne.s32.totalorder %v56, 0
  %vm151 = vcmp.ne.s32.totalorder %v63, 0
  %vm152 = vcmp.ne.s32.totalorder %v70, 0
  %vm153 = vcmp.ne.s32.totalorder %v77, 0
  %vm154 = vcmp.ne.s32.totalorder %v84, 0
  %vm155 = vcmp.ne.s32.totalorder %v91, 0
  %vm156 = vcmp.ne.s32.totalorder %v98, 0
  %vm157 = vcmp.ne.s32.totalorder %v105, 0
  %vm158 = vcmp.ne.s32.totalorder %v112, 0
  %vm159 = vcmp.ne.s32.totalorder %v119, 0
  %vm160 = vcmp.ne.s32.totalorder %v126, 0
  %vm161 = vcmp.ne.s32.totalorder %v133, 0
  %vm162 = vcmp.ne.s32.totalorder %v140, 0
  %vm163 = vcmp.ne.s32.totalorder %v147, 0
  %vm164 = vcmp.lt.s32.totalorder %v42, 0
  %vm165 = vcmp.lt.s32.totalorder %v49, 0
  %vm166 = vcmp.lt.s32.totalorder %v56, 0
  %vm167 = vcmp.lt.s32.totalorder %v63, 0
  %vm168 = vcmp.lt.s32.totalorder %v70, 0
  %vm169 = vcmp.lt.s32.totalorder %v77, 0
  %vm170 = vcmp.lt.s32.totalorder %v84, 0
  %vm171 = vcmp.lt.s32.totalorder %v91, 0
  %vm172 = vcmp.lt.s32.totalorder %v98, 0
  %vm173 = vcmp.lt.s32.totalorder %v105, 0
  %vm174 = vcmp.lt.s32.totalorder %v112, 0
  %vm175 = vcmp.lt.s32.totalorder %v119, 0
  %vm176 = vcmp.lt.s32.totalorder %v126, 0
  %vm177 = vcmp.lt.s32.totalorder %v133, 0
  %vm178 = vcmp.lt.s32.totalorder %v140, 0
  %vm179 = vcmp.lt.s32.totalorder %v147, 0
  %vm180 = vmand %vm164, %vm148
  %vm181 = vmand %vm165, %vm149
  %vm182 = vmand %vm166, %vm150
  %vm183 = vmand %vm167, %vm151
  %vm184 = vmand %vm168, %vm152
  %vm185 = vmand %vm169, %vm153
  %vm186 = vmand %vm170, %vm154
  %vm187 = vmand %vm171, %vm155
  %vm188 = vmand %vm172, %vm156
  %vm189 = vmand %vm173, %vm157
  %vm190 = vmand %vm174, %vm158
  %vm191 = vmand %vm175, %vm159
  %vm192 = vmand %vm176, %vm160
  %vm193 = vmand %vm177, %vm161
  %vm194 = vmand %vm178, %vm162
  %vm195 = vmand %vm179, %vm163
  %v196 = vadd.s32 %v42, 8
  %v197 = vadd.s32 %v49, 8
  %v198 = vadd.s32 %v56, 8
  %v199 = vadd.s32 %v63, 8
  %v200 = vadd.s32 %v70, 8
  %v201 = vadd.s32 %v77, 8
  %v202 = vadd.s32 %v84, 8
  %v203 = vadd.s32 %v91, 8
  %v204 = vadd.s32 %v98, 8
  %v205 = vadd.s32 %v105, 8
  %v206 = vadd.s32 %v112, 8
  %v207 = vadd.s32 %v119, 8
  %v208 = vadd.s32 %v126, 8
  %v209 = vadd.s32 %v133, 8
  %v210 = vadd.s32 %v140, 8
  %v211 = vadd.s32 %v147, 8
  %v212 = vsel %vm180, %v196, %v42
  %v213 = vsel %vm181, %v197, %v49
  %v214 = vsel %vm182, %v198, %v56
  %v215 = vsel %vm183, %v199, %v63
  %v216 = vsel %vm184, %v200, %v70
  %v217 = vsel %vm185, %v201, %v77
  %v218 = vsel %vm186, %v202, %v84
  %v219 = vsel %vm187, %v203, %v91
  %v220 = vsel %vm188, %v204, %v98
  %v221 = vsel %vm189, %v205, %v105
  %v222 = vsel %vm190, %v206, %v112
  %v223 = vsel %vm191, %v207, %v119
  %v224 = vsel %vm192, %v208, %v126
  %v225 = vsel %vm193, %v209, %v133
  %v226 = vsel %vm194, %v210, %v140
  %v227 = vsel %vm195, %v211, %v147
  %vm228 = vcmp.lt.s32.totalorder %v35, 0
  %v229 = vsub.s32 0, %v35
  %v230 = vsel %vm228, %v229, %v35
  %v231 = vshrl.u32 %v230, 3
  %v232 = vand.u32 %v230, 7
  %v233 = vsub.s32 0, %v232
  %v234 = vsel %vm228, %v233, %v232
  %vm235 = vcmp.ne.s32.totalorder %v234, 0
  %vm236 = vcmp.lt.s32.totalorder %v234, 0
  %vm237 = vmand %vm236, %vm235
  %v238 = vadd.s32 %v234, 8
  %v239 = vsel %vm237, %v238, %v234
  %vm240 = vcmp.eq.s32.totalorder %v212, %v239
  %vm241 = vcmp.eq.s32.totalorder %v213, %v239
  %vm242 = vcmp.eq.s32.totalorder %v214, %v239
  %vm243 = vcmp.eq.s32.totalorder %v215, %v239
  %vm244 = vcmp.eq.s32.totalorder %v216, %v239
  %vm245 = vcmp.eq.s32.totalorder %v217, %v239
  %vm246 = vcmp.eq.s32.totalorder %v218, %v239
  %vm247 = vcmp.eq.s32.totalorder %v219, %v239
  %vm248 = vcmp.eq.s32.totalorder %v220, %v239
  %vm249 = vcmp.eq.s32.totalorder %v221, %v239
  %vm250 = vcmp.eq.s32.totalorder %v222, %v239
  %vm251 = vcmp.eq.s32.totalorder %v223, %v239
  %vm252 = vcmp.eq.s32.totalorder %v224, %v239
  %vm253 = vcmp.eq.s32.totalorder %v225, %v239
  %vm254 = vcmp.eq.s32.totalorder %v226, %v239
  %vm255 = vcmp.eq.s32.totalorder %v227, %v239
  %v256 = vsel %vm240, 1, 0
  %v257 = vsel %vm241, 1, 0
  %v258 = vsel %vm242, 1, 0
  %v259 = vsel %vm243, 1, 0
  %v260 = vsel %vm244, 1, 0
  %v261 = vsel %vm245, 1, 0
  %v262 = vsel %vm246, 1, 0
  %v263 = vsel %vm247, 1, 0
  %v264 = vsel %vm248, 1, 0
  %v265 = vsel %vm249, 1, 0
  %v266 = vsel %vm250, 1, 0
  %v267 = vsel %vm251, 1, 0
  %v268 = vsel %vm252, 1, 0
  %v269 = vsel %vm253, 1, 0
  %v270 = vsel %vm254, 1, 0
  %v271 = vsel %vm255, 1, 0
  %v272 = vcvt.s32.f32 %v256
  %v273 = vcvt.s32.f32 %v257
  %v274 = vcvt.s32.f32 %v258
  %v275 = vcvt.s32.f32 %v259
  %v276 = vcvt.s32.f32 %v260
  %v277 = vcvt.s32.f32 %v261
  %v278 = vcvt.s32.f32 %v262
  %v279 = vcvt.s32.f32 %v263
  %v280 = vcvt.s32.f32 %v264
  %v281 = vcvt.s32.f32 %v265
  %v282 = vcvt.s32.f32 %v266
  %v283 = vcvt.s32.f32 %v267
  %v284 = vcvt.s32.f32 %v268
  %v285 = vcvt.s32.f32 %v269
  %v286 = vcvt.s32.f32 %v270
  %v287 = vcvt.s32.f32 %v271
  %v288 = vld [vmem:[%s0] sm:$0xff]
  %v289 = vld [vmem:[%s0 + $0x8] sm:$0xff]
  %v290 = vld [vmem:[%s0 + $0x10] sm:$0x3]
  %v291 = vld [vmem:[%s0 + $0x18] sm:$0xff]
  %v292 = vld [vmem:[%s0 + $0x20] sm:$0xff]
  %v293 = vld [vmem:[%s0 + $0x28] sm:$0x3]
  %v294 = vld [vmem:[%s1] sm:$0xff]
  %v295 = vld [vmem:[%s1 + $0x8] sm:$0xff]
  %v296 = vld [vmem:[%s1 + $0x10] sm:$0xff]
  %v297 = vld [vmem:[%s1 + $0x18] sm:$0xff]
  %v298 = vld [vmem:[%s1 + $0x20] sm:$0xff]
  %v299 = vld [vmem:[%s1 + $0x28] sm:$0xff]
  %v300 = vld [vmem:[%s1 + $0x30] sm:$0xff]
  %v301 = vld [vmem:[%s1 + $0x38] sm:$0xff]
  %vm308 = vcmask 1046528
  %v309 = vrot.slane %v288, 1
  %v310 = vrot.slane %v289, 1
  %v311 = vsel %vm308, %v309, %v310
  %v312 = vrot.slane %v290, 1
  %v313 = vsel %vm308, %v310, %v312
  %v314 = vrot.slane %v291, 1
  %v315 = vrot.slane %v292, 1
  %v316 = vsel %vm308, %v314, %v315
  %v317 = vrot.slane %v293, 1
  %v318 = vsel %vm308, %v315, %v317
  %s319 = scalar_lea.vmem %s1, 64
  %v320 = vld [vmem:[%s319] sm:$0xff]
  %v321 = vld [vmem:[%s319 + $0x8] sm:$0xff]
  %v322 = vld [vmem:[%s319 + $0x10] sm:$0xff]
  %v323 = vld [vmem:[%s319 + $0x18] sm:$0xff]
  %v324 = vld [vmem:[%s319 + $0x20] sm:$0xff]
  %v325 = vld [vmem:[%s319 + $0x28] sm:$0xff]
  %v326 = vld [vmem:[%s319 + $0x30] sm:$0xff]
  %v327 = vld [vmem:[%s319 + $0x38] sm:$0xff]
  %vm328 = vcmask 523264
  %v329 = vsel %vm328, %v311, 0
  %v331 = vsel %vm328, %v313, 0
  %v333 = vsel %vm328, %v316, 0
  %v335 = vsel %vm328, %v318, 0
  %337 = vmatprep.subr.mxu0 0.0
  %338 = vmatpush1.msra.mxu0 0.0
  %339 = vmatprep.subr.mxu0 0.0
  %340 = vmatpush1.msra.mxu0 0.0
  %341 = vmatprep.subr.mxu0 0.0
  %342 = vmatpush1.msra.mxu0 0.0
  %343 = vmatprep.subr.mxu0 0.0
  %344 = vmatpush1.msra.mxu0 0.0
  %345 = vmatprep.subr.mxu0 0.0
  %346 = vmatpush1.msra.mxu0 0.0
  %347 = vmatprep.subr.mxu0 0.0
  %348 = vmatpush1.msra.mxu0 0.0
  %349 = vmatprep.subr.mxu0 0.0
  %350 = vmatpush1.msra.mxu0 0.0
  %351 = vmatprep.subr.mxu0 0.0
  %352 = vmatpush1.msra.mxu0 0.0
  %353 = vmatprep.subr.mxu0 0.0
  %354 = vmatpush1.msra.mxu0 %v327
  %355 = vmatprep.subr.mxu0 0.0
  %356 = vmatpush1.msra.mxu0 %v326
  %357 = vmatprep.subr.mxu0 0.0
  %358 = vmatpush1.msra.mxu0 %v325
  %359 = vmatprep.subr.mxu0 0.0
  %360 = vmatpush1.msra.mxu0 %v324
  %361 = vmatprep.subr.mxu0 0.0
  %362 = vmatpush1.msra.mxu0 %v323
  %363 = vmatprep.subr.mxu0 0.0
  %364 = vmatpush1.msra.mxu0 %v322
  %365 = vmatprep.subr.mxu0 0.0
  %366 = vmatpush1.msra.mxu0 %v321
  %367 = vmatprep.subr.mxu0 0.0
  %368 = vmatpush1.msra.mxu0 %v320
  %369 = vmatprep.subr.mxu0 0.0
  %370 = vmatpush2.msra.mxu0 0.0
  %371 = vmatprep.subr.mxu0 0.0
  %372 = vmatpush2.msra.mxu0 0.0
  %373 = vmatprep.subr.mxu0 0.0
  %374 = vmatpush2.msra.mxu0 0.0
  %375 = vmatprep.subr.mxu0 0.0
  %376 = vmatpush2.msra.mxu0 0.0
  %377 = vmatprep.subr.mxu0 0.0
  %378 = vmatpush2.msra.mxu0 0.0
  %379 = vmatprep.subr.mxu0 0.0
  %380 = vmatpush2.msra.mxu0 0.0
  %381 = vmatprep.subr.mxu0 0.0
  %382 = vmatpush2.msra.mxu0 0.0
  %383 = vmatprep.subr.mxu0 0.0
  %384 = vmatpush2.msra.mxu0 0.0
  %385 = vmatprep.subr.mxu0 0.0
  %386 = vmatpush2.msra.mxu0 0.0
  %387 = vmatprep.subr.mxu0 0.0
  %388 = vmatpush2.msra.mxu0 0.0
  %389 = vmatprep.subr.mxu0 0.0
  %390 = vmatpush2.msra.mxu0 0.0
  %391 = vmatprep.subr.mxu0 0.0
  %392 = vmatpush2.msra.mxu0 0.0
  %393 = vmatprep.subr.mxu0 0.0
  %394 = vmatpush2.msra.mxu0 0.0
  %395 = vmatprep.subr.mxu0 0.0
  %396 = vmatpush2.msra.mxu0 0.0
  %397 = vmatprep.subr.mxu0 0.0
  %398 = vmatpush2.msra.mxu0 0.0
  %399 = vmatprep.subr.mxu0 0.0
  %400 = vmatpush2.msra.mxu0 0.0
  %401 = vmatprep.mubr.f32.mxu0 0.0
  %402 = vmatmul.mubr.f32.gmra.mxu0 %v329
  %v403 = vpop.f32.mrf.mxu0
  %v404 = vadd.f32 0.0, %v403
  %v405 = vpop.f32.mrf.mxu0
  %406 = vmatprep.mubr.f32.mxu0 0.0
  %407 = vmatmul.mubr.f32.gmra.mxu0 %v331
  %v408 = vpop.f32.mrf.mxu0
  %v409 = vadd.f32 0.0, %v408
  %v410 = vpop.f32.mrf.mxu0
  %411 = vmatprep.mubr.f32.mxu0 0.0
  %412 = vmatmul.mubr.f32.gmra.mxu0 %v333
  %v413 = vpop.f32.mrf.mxu0
  %v414 = vadd.f32 0.0, %v413
  %v415 = vpop.f32.mrf.mxu0
  %416 = vmatprep.mubr.f32.mxu0 0.0
  %417 = vmatmul.mubr.f32.gmra.mxu0 %v335
  %v418 = vpop.f32.mrf.mxu0
  %v419 = vadd.f32 0.0, %v418
  %v420 = vpop.f32.mrf.mxu0
  %421 = vdwg.mxu0
  %v422 = vsel %vm328, %v288, 0
  %v424 = vsel %vm328, %v289, 0
  %v426 = vsel %vm328, %v291, 0
  %v428 = vsel %vm328, %v292, 0
  %430 = vmatprep.subr.mxu0 0.0
  %431 = vmatpush1.msra.mxu0 0.0
  %432 = vmatprep.subr.mxu0 0.0
  %433 = vmatpush1.msra.mxu0 0.0
  %434 = vmatprep.subr.mxu0 0.0
  %435 = vmatpush1.msra.mxu0 0.0
  %436 = vmatprep.subr.mxu0 0.0
  %437 = vmatpush1.msra.mxu0 0.0
  %438 = vmatprep.subr.mxu0 0.0
  %439 = vmatpush1.msra.mxu0 0.0
  %440 = vmatprep.subr.mxu0 0.0
  %441 = vmatpush1.msra.mxu0 0.0
  %442 = vmatprep.subr.mxu0 0.0
  %443 = vmatpush1.msra.mxu0 0.0
  %444 = vmatprep.subr.mxu0 0.0
  %445 = vmatpush1.msra.mxu0 0.0
  %446 = vmatprep.subr.mxu0 0.0
  %447 = vmatpush1.msra.mxu0 %v301
  %448 = vmatprep.subr.mxu0 0.0
  %449 = vmatpush1.msra.mxu0 %v300
  %450 = vmatprep.subr.mxu0 0.0
  %451 = vmatpush1.msra.mxu0 %v299
  %452 = vmatprep.subr.mxu0 0.0
  %453 = vmatpush1.msra.mxu0 %v298
  %454 = vmatprep.subr.mxu0 0.0
  %455 = vmatpush1.msra.mxu0 %v297
  %456 = vmatprep.subr.mxu0 0.0
  %457 = vmatpush1.msra.mxu0 %v296
  %458 = vmatprep.subr.mxu0 0.0
  %459 = vmatpush1.msra.mxu0 %v295
  %460 = vmatprep.subr.mxu0 0.0
  %461 = vmatpush1.msra.mxu0 %v294
  %462 = vmatprep.subr.mxu0 0.0
  %463 = vmatpush2.msra.mxu0 0.0
  %464 = vmatprep.subr.mxu0 0.0
  %465 = vmatpush2.msra.mxu0 0.0
  %466 = vmatprep.subr.mxu0 0.0
  %467 = vmatpush2.msra.mxu0 0.0
  %468 = vmatprep.subr.mxu0 0.0
  %469 = vmatpush2.msra.mxu0 0.0
  %470 = vmatprep.subr.mxu0 0.0
  %471 = vmatpush2.msra.mxu0 0.0
  %472 = vmatprep.subr.mxu0 0.0
  %473 = vmatpush2.msra.mxu0 0.0
  %474 = vmatprep.subr.mxu0 0.0
  %475 = vmatpush2.msra.mxu0 0.0
  %476 = vmatprep.subr.mxu0 0.0
  %477 = vmatpush2.msra.mxu0 0.0
  %478 = vmatprep.subr.mxu0 0.0
  %479 = vmatpush2.msra.mxu0 0.0
  %480 = vmatprep.subr.mxu0 0.0
  %481 = vmatpush2.msra.mxu0 0.0
  %482 = vmatprep.subr.mxu0 0.0
  %483 = vmatpush2.msra.mxu0 0.0
  %484 = vmatprep.subr.mxu0 0.0
  %485 = vmatpush2.msra.mxu0 0.0
  %486 = vmatprep.subr.mxu0 0.0
  %487 = vmatpush2.msra.mxu0 0.0
  %488 = vmatprep.subr.mxu0 0.0
  %489 = vmatpush2.msra.mxu0 0.0
  %490 = vmatprep.subr.mxu0 0.0
  %491 = vmatpush2.msra.mxu0 0.0
  %492 = vmatprep.subr.mxu0 0.0
  %493 = vmatpush2.msra.mxu0 0.0
  %494 = vmatprep.mubr.f32.mxu0 0.0
  %495 = vmatmul.mubr.f32.gmra.mxu0 %v422
  %v496 = vpop.f32.mrf.mxu0
  %v497 = vadd.f32 %v404, %v496
  %v498 = vpop.f32.mrf.mxu0
  %499 = vmatprep.mubr.f32.mxu0 0.0
  %500 = vmatmul.mubr.f32.gmra.mxu0 %v424
  %v501 = vpop.f32.mrf.mxu0
  %v502 = vadd.f32 %v409, %v501
  %v503 = vpop.f32.mrf.mxu0
  %504 = vmatprep.mubr.f32.mxu0 0.0
  %505 = vmatmul.mubr.f32.gmra.mxu0 %v426
  %v506 = vpop.f32.mrf.mxu0
  %v507 = vadd.f32 %v414, %v506
  %v508 = vpop.f32.mrf.mxu0
  %509 = vmatprep.mubr.f32.mxu0 0.0
  %510 = vmatmul.mubr.f32.gmra.mxu0 %v428
  %v511 = vpop.f32.mrf.mxu0
  %v512 = vadd.f32 %v419, %v511
  %v513 = vpop.f32.mrf.mxu0
  %514 = vdwg.mxu0
  %vm515 = vcmask 1045504
  %v516 = vrot.slane %v288, 2
  %v517 = vrot.slane %v289, 2
  %v518 = vsel %vm515, %v516, %v517
  %v519 = vrot.slane %v290, 2
  %v520 = vsel %vm515, %v517, %v519
  %v521 = vrot.slane %v291, 2
  %v522 = vrot.slane %v292, 2
  %v523 = vsel %vm515, %v521, %v522
  %v524 = vrot.slane %v293, 2
  %v525 = vsel %vm515, %v522, %v524
  %s526 = scalar_lea.vmem %s1, 128
  %v527 = vld [vmem:[%s526] sm:$0xff]
  %v528 = vld [vmem:[%s526 + $0x8] sm:$0xff]
  %v529 = vld [vmem:[%s526 + $0x10] sm:$0xff]
  %v530 = vld [vmem:[%s526 + $0x18] sm:$0xff]
  %v531 = vld [vmem:[%s526 + $0x20] sm:$0xff]
  %v532 = vld [vmem:[%s526 + $0x28] sm:$0xff]
  %v533 = vld [vmem:[%s526 + $0x30] sm:$0xff]
  %v534 = vld [vmem:[%s526 + $0x38] sm:$0xff]
  %v535 = vsel %vm328, %v518, 0
  %v537 = vsel %vm328, %v520, 0
  %v539 = vsel %vm328, %v523, 0
  %v541 = vsel %vm328, %v525, 0
  %543 = vmatprep.subr.mxu0 0.0
  %544 = vmatpush1.msra.mxu0 0.0
  %545 = vmatprep.subr.mxu0 0.0
  %546 = vmatpush1.msra.mxu0 0.0
  %547 = vmatprep.subr.mxu0 0.0
  %548 = vmatpush1.msra.mxu0 0.0
  %549 = vmatprep.subr.mxu0 0.0
  %550 = vmatpush1.msra.mxu0 0.0
  %551 = vmatprep.subr.mxu0 0.0
  %552 = vmatpush1.msra.mxu0 0.0
  %553 = vmatprep.subr.mxu0 0.0
  %554 = vmatpush1.msra.mxu0 0.0
  %555 = vmatprep.subr.mxu0 0.0
  %556 = vmatpush1.msra.mxu0 0.0
  %557 = vmatprep.subr.mxu0 0.0
  %558 = vmatpush1.msra.mxu0 0.0
  %559 = vmatprep.subr.mxu0 0.0
  %560 = vmatpush1.msra.mxu0 %v534
  %561 = vmatprep.subr.mxu0 0.0
  %562 = vmatpush1.msra.mxu0 %v533
  %563 = vmatprep.subr.mxu0 0.0
  %564 = vmatpush1.msra.mxu0 %v532
  %565 = vmatprep.subr.mxu0 0.0
  %566 = vmatpush1.msra.mxu0 %v531
  %567 = vmatprep.subr.mxu0 0.0
  %568 = vmatpush1.msra.mxu0 %v530
  %569 = vmatprep.subr.mxu0 0.0
  %570 = vmatpush1.msra.mxu0 %v529
  %571 = vmatprep.subr.mxu0 0.0
  %572 = vmatpush1.msra.mxu0 %v528
  %573 = vmatprep.subr.mxu0 0.0
  %574 = vmatpush1.msra.mxu0 %v527
  %575 = vmatprep.subr.mxu0 0.0
  %576 = vmatpush2.msra.mxu0 0.0
  %577 = vmatprep.subr.mxu0 0.0
  %578 = vmatpush2.msra.mxu0 0.0
  %579 = vmatprep.subr.mxu0 0.0
  %580 = vmatpush2.msra.mxu0 0.0
  %581 = vmatprep.subr.mxu0 0.0
  %582 = vmatpush2.msra.mxu0 0.0
  %583 = vmatprep.subr.mxu0 0.0
  %584 = vmatpush2.msra.mxu0 0.0
  %585 = vmatprep.subr.mxu0 0.0
  %586 = vmatpush2.msra.mxu0 0.0
  %587 = vmatprep.subr.mxu0 0.0
  %588 = vmatpush2.msra.mxu0 0.0
  %589 = vmatprep.subr.mxu0 0.0
  %590 = vmatpush2.msra.mxu0 0.0
  %591 = vmatprep.subr.mxu0 0.0
  %592 = vmatpush2.msra.mxu0 0.0
  %593 = vmatprep.subr.mxu0 0.0
  %594 = vmatpush2.msra.mxu0 0.0
  %595 = vmatprep.subr.mxu0 0.0
  %596 = vmatpush2.msra.mxu0 0.0
  %597 = vmatprep.subr.mxu0 0.0
  %598 = vmatpush2.msra.mxu0 0.0
  %599 = vmatprep.subr.mxu0 0.0
  %600 = vmatpush2.msra.mxu0 0.0
  %601 = vmatprep.subr.mxu0 0.0
  %602 = vmatpush2.msra.mxu0 0.0
  %603 = vmatprep.subr.mxu0 0.0
  %604 = vmatpush2.msra.mxu0 0.0
  %605 = vmatprep.subr.mxu0 0.0
  %606 = vmatpush2.msra.mxu0 0.0
  %607 = vmatprep.mubr.f32.mxu0 0.0
  %608 = vmatmul.mubr.f32.gmra.mxu0 %v535
  %v609 = vpop.f32.mrf.mxu0
  %v610 = vadd.f32 0.0, %v609
  %v611 = vpop.f32.mrf.mxu0
  %612 = vmatprep.mubr.f32.mxu0 0.0
  %613 = vmatmul.mubr.f32.gmra.mxu0 %v537
  %v614 = vpop.f32.mrf.mxu0
  %v615 = vadd.f32 0.0, %v614
  %v616 = vpop.f32.mrf.mxu0
  %617 = vmatprep.mubr.f32.mxu0 0.0
  %618 = vmatmul.mubr.f32.gmra.mxu0 %v539
  %v619 = vpop.f32.mrf.mxu0
  %v620 = vadd.f32 0.0, %v619
  %v621 = vpop.f32.mrf.mxu0
  %622 = vmatprep.mubr.f32.mxu0 0.0
  %623 = vmatmul.mubr.f32.gmra.mxu0 %v541
  %v624 = vpop.f32.mrf.mxu0
  %v625 = vadd.f32 0.0, %v624
  %v626 = vpop.f32.mrf.mxu0
  %627 = vdwg.mxu0
  %v628 = vadd.f32 %v497, %v610
  %v629 = vadd.f32 %v502, %v615
  %v630 = vadd.f32 %v507, %v620
  %v631 = vadd.f32 %v512, %v625
  %v632 = vld [vmem:[%s3] sm:$0x1]
  %v633 = vld [vmem:[%s3 + $0x1] sm:$0x1]
  %v634 = vadd.f32 %v628, %v629
  %v635 = vadd.f32 %v634, %v630
  %v636 = vadd.f32 %v635, %v631
  %v637 = vrot.slane %v636, 4
  %v638 = vadd.f32 %v636, %v637
  %v639 = vrot.slane %v638, 2
  %v640 = vadd.f32 %v638, %v639
  %v641 = vrot.slane %v640, 1
  %v642 = vadd.f32 %v640, %v641
  %643 = vmatprep.subr.mxu0 0.0
  %644 = vmatpush1.msra.mxu0 %v287
  %645 = vmatprep.subr.mxu0 0.0
  %646 = vmatpush1.msra.mxu0 %v286
  %647 = vmatprep.subr.mxu0 0.0
  %648 = vmatpush1.msra.mxu0 %v285
  %649 = vmatprep.subr.mxu0 0.0
  %650 = vmatpush1.msra.mxu0 %v284
  %651 = vmatprep.subr.mxu0 0.0
  %652 = vmatpush1.msra.mxu0 %v283
  %653 = vmatprep.subr.mxu0 0.0
  %654 = vmatpush1.msra.mxu0 %v282
  %655 = vmatprep.subr.mxu0 0.0
  %656 = vmatpush1.msra.mxu0 %v281
  %657 = vmatprep.subr.mxu0 0.0
  %658 = vmatpush1.msra.mxu0 %v280
  %659 = vmatprep.subr.mxu0 0.0
  %660 = vmatpush1.msra.mxu0 %v279
  %661 = vmatprep.subr.mxu0 0.0
  %662 = vmatpush1.msra.mxu0 %v278
  %663 = vmatprep.subr.mxu0 0.0
  %664 = vmatpush1.msra.mxu0 %v277
  %665 = vmatprep.subr.mxu0 0.0
  %666 = vmatpush1.msra.mxu0 %v276
  %667 = vmatprep.subr.mxu0 0.0
  %668 = vmatpush1.msra.mxu0 %v275
  %669 = vmatprep.subr.mxu0 0.0
  %670 = vmatpush1.msra.mxu0 %v274
  %671 = vmatprep.subr.mxu0 0.0
  %672 = vmatpush1.msra.mxu0 %v273
  %673 = vmatprep.subr.mxu0 0.0
  %674 = vmatpush1.msra.mxu0 %v272
  %675 = vmatprep.subr.mxu0 0.0
  %676 = vmatpush2.msra.mxu0 0.0
  %677 = vmatprep.subr.mxu0 0.0
  %678 = vmatpush2.msra.mxu0 0.0
  %679 = vmatprep.subr.mxu0 0.0
  %680 = vmatpush2.msra.mxu0 0.0
  %681 = vmatprep.subr.mxu0 0.0
  %682 = vmatpush2.msra.mxu0 0.0
  %683 = vmatprep.subr.mxu0 0.0
  %684 = vmatpush2.msra.mxu0 0.0
  %685 = vmatprep.subr.mxu0 0.0
  %686 = vmatpush2.msra.mxu0 0.0
  %687 = vmatprep.subr.mxu0 0.0
  %688 = vmatpush2.msra.mxu0 0.0
  %689 = vmatprep.subr.mxu0 0.0
  %690 = vmatpush2.msra.mxu0 0.0
  %691 = vmatprep.subr.mxu0 0.0
  %692 = vmatpush2.msra.mxu0 0.0
  %693 = vmatprep.subr.mxu0 0.0
  %694 = vmatpush2.msra.mxu0 0.0
  %695 = vmatprep.subr.mxu0 0.0
  %696 = vmatpush2.msra.mxu0 0.0
  %697 = vmatprep.subr.mxu0 0.0
  %698 = vmatpush2.msra.mxu0 0.0
  %699 = vmatprep.subr.mxu0 0.0
  %700 = vmatpush2.msra.mxu0 0.0
  %701 = vmatprep.subr.mxu0 0.0
  %702 = vmatpush2.msra.mxu0 0.0
  %703 = vmatprep.subr.mxu0 0.0
  %704 = vmatpush2.msra.mxu0 0.0
  %705 = vmatprep.subr.mxu0 0.0
  %706 = vmatpush2.msra.mxu0 0.0
  %707 = vmatprep.mubr.f32.mxu0 0.0
  %708 = vmatmul.mubr.f32.gmra.mxu0 %v642
  %v709 = vpop.f32.mrf.mxu0
  %v710 = vadd.f32 0.0, %v709
  %v711 = vpop.f32.mrf.mxu0
  %712 = vdwg.mxu0
  %v713 = vmul.f32 %v710, 0.001953125
  %v714 = vlaneseq
  %v715 = vshrl.u32 %v714, 7
  %v716 = vsub.s32 0, %v715
  %v717 = vrot.slane %v713, %v716
  %v718 = vsub.f32 %v628, %v717
  %v719 = vsub.f32 %v629, %v717
  %v720 = vsub.f32 %v630, %v717
  %v721 = vsub.f32 %v631, %v717
  %v722 = vmul.f32 %v718, %v718
  %v723 = vmul.f32 %v719, %v719
  %v724 = vmul.f32 %v720, %v720
  %v725 = vmul.f32 %v721, %v721
  %v726 = vadd.f32 %v722, %v723
  %v727 = vadd.f32 %v726, %v724
  %v728 = vadd.f32 %v727, %v725
  %v729 = vrot.slane %v728, 4
  %v730 = vadd.f32 %v728, %v729
  %v731 = vrot.slane %v730, 2
  %v732 = vadd.f32 %v730, %v731
  %v733 = vrot.slane %v732, 1
  %v734 = vadd.f32 %v732, %v733
  %735 = vmatprep.subr.mxu0 0.0
  %736 = vmatpush1.msra.mxu0 %v287
  %737 = vmatprep.subr.mxu0 0.0
  %738 = vmatpush1.msra.mxu0 %v286
  %739 = vmatprep.subr.mxu0 0.0
  %740 = vmatpush1.msra.mxu0 %v285
  %741 = vmatprep.subr.mxu0 0.0
  %742 = vmatpush1.msra.mxu0 %v284
  %743 = vmatprep.subr.mxu0 0.0
  %744 = vmatpush1.msra.mxu0 %v283
  %745 = vmatprep.subr.mxu0 0.0
  %746 = vmatpush1.msra.mxu0 %v282
  %747 = vmatprep.subr.mxu0 0.0
  %748 = vmatpush1.msra.mxu0 %v281
  %749 = vmatprep.subr.mxu0 0.0
  %750 = vmatpush1.msra.mxu0 %v280
  %751 = vmatprep.subr.mxu0 0.0
  %752 = vmatpush1.msra.mxu0 %v279
  %753 = vmatprep.subr.mxu0 0.0
  %754 = vmatpush1.msra.mxu0 %v278
  %755 = vmatprep.subr.mxu0 0.0
  %756 = vmatpush1.msra.mxu0 %v277
  %757 = vmatprep.subr.mxu0 0.0
  %758 = vmatpush1.msra.mxu0 %v276
  %759 = vmatprep.subr.mxu0 0.0
  %760 = vmatpush1.msra.mxu0 %v275
  %761 = vmatprep.subr.mxu0 0.0
  %762 = vmatpush1.msra.mxu0 %v274
  %763 = vmatprep.subr.mxu0 0.0
  %764 = vmatpush1.msra.mxu0 %v273
  %765 = vmatprep.subr.mxu0 0.0
  %766 = vmatpush1.msra.mxu0 %v272
  %767 = vmatprep.subr.mxu0 0.0
  %768 = vmatpush2.msra.mxu0 0.0
  %769 = vmatprep.subr.mxu0 0.0
  %770 = vmatpush2.msra.mxu0 0.0
  %771 = vmatprep.subr.mxu0 0.0
  %772 = vmatpush2.msra.mxu0 0.0
  %773 = vmatprep.subr.mxu0 0.0
  %774 = vmatpush2.msra.mxu0 0.0
  %775 = vmatprep.subr.mxu0 0.0
  %776 = vmatpush2.msra.mxu0 0.0
  %777 = vmatprep.subr.mxu0 0.0
  %778 = vmatpush2.msra.mxu0 0.0
  %779 = vmatprep.subr.mxu0 0.0
  %780 = vmatpush2.msra.mxu0 0.0
  %781 = vmatprep.subr.mxu0 0.0
  %782 = vmatpush2.msra.mxu0 0.0
  %783 = vmatprep.subr.mxu0 0.0
  %784 = vmatpush2.msra.mxu0 0.0
  %785 = vmatprep.subr.mxu0 0.0
  %786 = vmatpush2.msra.mxu0 0.0
  %787 = vmatprep.subr.mxu0 0.0
  %788 = vmatpush2.msra.mxu0 0.0
  %789 = vmatprep.subr.mxu0 0.0
  %790 = vmatpush2.msra.mxu0 0.0
  %791 = vmatprep.subr.mxu0 0.0
  %792 = vmatpush2.msra.mxu0 0.0
  %793 = vmatprep.subr.mxu0 0.0
  %794 = vmatpush2.msra.mxu0 0.0
  %795 = vmatprep.subr.mxu0 0.0
  %796 = vmatpush2.msra.mxu0 0.0
  %797 = vmatprep.subr.mxu0 0.0
  %798 = vmatpush2.msra.mxu0 0.0
  %799 = vmatprep.mubr.f32.mxu0 0.0
  %800 = vmatmul.mubr.f32.gmra.mxu0 %v734
  %v801 = vpop.f32.mrf.mxu0
  %v802 = vadd.f32 0.0, %v801
  %v803 = vpop.f32.mrf.mxu0
  %804 = vdwg.mxu0
  %v805 = vmul.f32 %v802, 0.001953125
  %v806 = vadd.f32 %v805, 1e-05
  %v807 = vrsqrt.pop %v806
  %v808 = vmul.f32 %v632, %v807
  %v809 = vmul.f32 %v713, %v808
  %v810 = vsub.f32 %v633, %v809
  %v811 = vlaneseq
  %v812 = vshrl.u32 %v811, 7
  %v813 = vsub.s32 0, %v812
  %v814 = vrot.slane %v808, %v813
  %v815 = vmul.f32 %v628, %v814
  %v816 = vmul.f32 %v629, %v814
  %v817 = vmul.f32 %v630, %v814
  %v818 = vmul.f32 %v631, %v814
  %v819 = vlaneseq
  %v820 = vshrl.u32 %v819, 7
  %v821 = vsub.s32 0, %v820
  %v822 = vrot.slane %v810, %v821
  %v823 = vadd.f32 %v815, %v822
  %v824 = vadd.f32 %v816, %v822
  %v825 = vadd.f32 %v817, %v822
  %v826 = vadd.f32 %v818, %v822
  %v827 = vmax.f32 %v823, 0.0
  %v828 = vmax.f32 %v824, 0.0
  %v829 = vmax.f32 %v825, 0.0
  %v830 = vmax.f32 %v826, 0.0
  %vm835 = vcmask 1040384
  %v836 = vrot.slane %v827, 7
  %v837 = vrot.slane %v828, 7
  %v838 = vsel %vm835, %v836, %v837
  %v839 = vrot.slane %v829, 7
  %v840 = vrot.slane %v830, 7
  %v841 = vsel %vm835, %v839, %v840
  %v848 = vsel %vm835, 0.0, %v836
  %v849 = vsel %vm835, 0.0, %v839
  %v850 = vsel %vm835, %v837, 0.0
  %v851 = vsel %vm835, %v840, 0.0
  %v852 = vld [vmem:[%s2] sm:$0xff]
  %v853 = vld [vmem:[%s2 + $0x8] sm:$0xff]
  %v854 = vld [vmem:[%s2 + $0x10] sm:$0xff]
  %v855 = vld [vmem:[%s2 + $0x18] sm:$0xff]
  %v856 = vld [vmem:[%s2 + $0x20] sm:$0xff]
  %v857 = vld [vmem:[%s2 + $0x28] sm:$0xff]
  %v858 = vld [vmem:[%s2 + $0x30] sm:$0xff]
  %v859 = vld [vmem:[%s2 + $0x38] sm:$0xff]
  %v860 = vld [vmem:[%s2 + $0x40] sm:$0xff]
  %v861 = vld [vmem:[%s2 + $0x48] sm:$0xff]
  %v862 = vld [vmem:[%s2 + $0x50] sm:$0xff]
  %v863 = vld [vmem:[%s2 + $0x58] sm:$0xff]
  %v864 = vld [vmem:[%s2 + $0x60] sm:$0xff]
  %v865 = vld [vmem:[%s2 + $0x68] sm:$0xff]
  %v866 = vld [vmem:[%s2 + $0x70] sm:$0xff]
  %v867 = vld [vmem:[%s2 + $0x78] sm:$0xff]
  %v872 = vrot.slane %v848, 1
  %v873 = vrot.slane %v838, 1
  %v874 = vsel %vm308, %v872, %v873
  %v875 = vrot.slane %v850, 1
  %v876 = vsel %vm308, %v873, %v875
  %v877 = vrot.slane %v849, 1
  %v878 = vrot.slane %v841, 1
  %v879 = vsel %vm308, %v877, %v878
  %v880 = vrot.slane %v851, 1
  %v881 = vsel %vm308, %v878, %v880
  %s886 = scalar_lea.vmem %s2, 128
  %v887 = vld [vmem:[%s886] sm:$0xff]
  %v888 = vld [vmem:[%s886 + $0x8] sm:$0xff]
  %v889 = vld [vmem:[%s886 + $0x10] sm:$0xff]
  %v890 = vld [vmem:[%s886 + $0x18] sm:$0xff]
  %v891 = vld [vmem:[%s886 + $0x20] sm:$0xff]
  %v892 = vld [vmem:[%s886 + $0x28] sm:$0xff]
  %v893 = vld [vmem:[%s886 + $0x30] sm:$0xff]
  %v894 = vld [vmem:[%s886 + $0x38] sm:$0xff]
  %v895 = vld [vmem:[%s886 + $0x40] sm:$0xff]
  %v896 = vld [vmem:[%s886 + $0x48] sm:$0xff]
  %v897 = vld [vmem:[%s886 + $0x50] sm:$0xff]
  %v898 = vld [vmem:[%s886 + $0x58] sm:$0xff]
  %v899 = vld [vmem:[%s886 + $0x60] sm:$0xff]
  %v900 = vld [vmem:[%s886 + $0x68] sm:$0xff]
  %v901 = vld [vmem:[%s886 + $0x70] sm:$0xff]
  %v902 = vld [vmem:[%s886 + $0x78] sm:$0xff]
  %903 = vmatprep.subr.mxu0 0.0
  %904 = vmatpush1.msra.mxu0 %v902
  %905 = vmatprep.subr.mxu0 0.0
  %906 = vmatpush1.msra.mxu0 %v901
  %907 = vmatprep.subr.mxu0 0.0
  %908 = vmatpush1.msra.mxu0 %v900
  %909 = vmatprep.subr.mxu0 0.0
  %910 = vmatpush1.msra.mxu0 %v899
  %911 = vmatprep.subr.mxu0 0.0
  %912 = vmatpush1.msra.mxu0 %v898
  %913 = vmatprep.subr.mxu0 0.0
  %914 = vmatpush1.msra.mxu0 %v897
  %915 = vmatprep.subr.mxu0 0.0
  %916 = vmatpush1.msra.mxu0 %v896
  %917 = vmatprep.subr.mxu0 0.0
  %918 = vmatpush1.msra.mxu0 %v895
  %919 = vmatprep.subr.mxu0 0.0
  %920 = vmatpush1.msra.mxu0 %v894
  %921 = vmatprep.subr.mxu0 0.0
  %922 = vmatpush1.msra.mxu0 %v893
  %923 = vmatprep.subr.mxu0 0.0
  %924 = vmatpush1.msra.mxu0 %v892
  %925 = vmatprep.subr.mxu0 0.0
  %926 = vmatpush1.msra.mxu0 %v891
  %927 = vmatprep.subr.mxu0 0.0
  %928 = vmatpush1.msra.mxu0 %v890
  %929 = vmatprep.subr.mxu0 0.0
  %930 = vmatpush1.msra.mxu0 %v889
  %931 = vmatprep.subr.mxu0 0.0
  %932 = vmatpush1.msra.mxu0 %v888
  %933 = vmatprep.subr.mxu0 0.0
  %934 = vmatpush1.msra.mxu0 %v887
  %935 = vmatprep.subr.mxu0 0.0
  %936 = vmatpush2.msra.mxu0 0.0
  %937 = vmatprep.subr.mxu0 0.0
  %938 = vmatpush2.msra.mxu0 0.0
  %939 = vmatprep.subr.mxu0 0.0
  %940 = vmatpush2.msra.mxu0 0.0
  %941 = vmatprep.subr.mxu0 0.0
  %942 = vmatpush2.msra.mxu0 0.0
  %943 = vmatprep.subr.mxu0 0.0
  %944 = vmatpush2.msra.mxu0 0.0
  %945 = vmatprep.subr.mxu0 0.0
  %946 = vmatpush2.msra.mxu0 0.0
  %947 = vmatprep.subr.mxu0 0.0
  %948 = vmatpush2.msra.mxu0 0.0
  %949 = vmatprep.subr.mxu0 0.0
  %950 = vmatpush2.msra.mxu0 0.0
  %951 = vmatprep.subr.mxu0 0.0
  %952 = vmatpush2.msra.mxu0 0.0
  %953 = vmatprep.subr.mxu0 0.0
  %954 = vmatpush2.msra.mxu0 0.0
  %955 = vmatprep.subr.mxu0 0.0
  %956 = vmatpush2.msra.mxu0 0.0
  %957 = vmatprep.subr.mxu0 0.0
  %958 = vmatpush2.msra.mxu0 0.0
  %959 = vmatprep.subr.mxu0 0.0
  %960 = vmatpush2.msra.mxu0 0.0
  %961 = vmatprep.subr.mxu0 0.0
  %962 = vmatpush2.msra.mxu0 0.0
  %963 = vmatprep.subr.mxu0 0.0
  %964 = vmatpush2.msra.mxu0 0.0
  %965 = vmatprep.subr.mxu0 0.0
  %966 = vmatpush2.msra.mxu0 0.0
  %967 = vmatprep.mubr.f32.mxu0 0.0
  %968 = vmatmul.mubr.f32.gmra.mxu0 %v874
  %v969 = vpop.f32.mrf.mxu0
  %v970 = vadd.f32 0.0, %v969
  %v971 = vpop.f32.mrf.mxu0
  %972 = vmatprep.mubr.f32.mxu0 0.0
  %973 = vmatmul.mubr.f32.gmra.mxu0 %v876
  %v974 = vpop.f32.mrf.mxu0
  %v975 = vadd.f32 0.0, %v974
  %v976 = vpop.f32.mrf.mxu0
  %977 = vmatprep.mubr.f32.mxu0 0.0
  %978 = vmatmul.mubr.f32.gmra.mxu0 %v879
  %v979 = vpop.f32.mrf.mxu0
  %v980 = vadd.f32 0.0, %v979
  %v981 = vpop.f32.mrf.mxu0
  %982 = vmatprep.mubr.f32.mxu0 0.0
  %983 = vmatmul.mubr.f32.gmra.mxu0 %v881
  %v984 = vpop.f32.mrf.mxu0
  %v985 = vadd.f32 0.0, %v984
  %v986 = vpop.f32.mrf.mxu0
  %987 = vdwg.mxu0
  %988 = vmatprep.subr.mxu0 0.0
  %989 = vmatpush1.msra.mxu0 %v867
  %990 = vmatprep.subr.mxu0 0.0
  %991 = vmatpush1.msra.mxu0 %v866
  %992 = vmatprep.subr.mxu0 0.0
  %993 = vmatpush1.msra.mxu0 %v865
  %994 = vmatprep.subr.mxu0 0.0
  %995 = vmatpush1.msra.mxu0 %v864
  %996 = vmatprep.subr.mxu0 0.0
  %997 = vmatpush1.msra.mxu0 %v863
  %998 = vmatprep.subr.mxu0 0.0
  %999 = vmatpush1.msra.mxu0 %v862
  %1000 = vmatprep.subr.mxu0 0.0
  %1001 = vmatpush1.msra.mxu0 %v861
  %1002 = vmatprep.subr.mxu0 0.0
  %1003 = vmatpush1.msra.mxu0 %v860
  %1004 = vmatprep.subr.mxu0 0.0
  %1005 = vmatpush1.msra.mxu0 %v859
  %1006 = vmatprep.subr.mxu0 0.0
  %1007 = vmatpush1.msra.mxu0 %v858
  %1008 = vmatprep.subr.mxu0 0.0
  %1009 = vmatpush1.msra.mxu0 %v857
  %1010 = vmatprep.subr.mxu0 0.0
  %1011 = vmatpush1.msra.mxu0 %v856
  %1012 = vmatprep.subr.mxu0 0.0
  %1013 = vmatpush1.msra.mxu0 %v855
  %1014 = vmatprep.subr.mxu0 0.0
  %1015 = vmatpush1.msra.mxu0 %v854
  %1016 = vmatprep.subr.mxu0 0.0
  %1017 = vmatpush1.msra.mxu0 %v853
  %1018 = vmatprep.subr.mxu0 0.0
  %1019 = vmatpush1.msra.mxu0 %v852
  %1020 = vmatprep.subr.mxu0 0.0
  %1021 = vmatpush2.msra.mxu0 0.0
  %1022 = vmatprep.subr.mxu0 0.0
  %1023 = vmatpush2.msra.mxu0 0.0
  %1024 = vmatprep.subr.mxu0 0.0
  %1025 = vmatpush2.msra.mxu0 0.0
  %1026 = vmatprep.subr.mxu0 0.0
  %1027 = vmatpush2.msra.mxu0 0.0
  %1028 = vmatprep.subr.mxu0 0.0
  %1029 = vmatpush2.msra.mxu0 0.0
  %1030 = vmatprep.subr.mxu0 0.0
  %1031 = vmatpush2.msra.mxu0 0.0
  %1032 = vmatprep.subr.mxu0 0.0
  %1033 = vmatpush2.msra.mxu0 0.0
  %1034 = vmatprep.subr.mxu0 0.0
  %1035 = vmatpush2.msra.mxu0 0.0
  %1036 = vmatprep.subr.mxu0 0.0
  %1037 = vmatpush2.msra.mxu0 0.0
  %1038 = vmatprep.subr.mxu0 0.0
  %1039 = vmatpush2.msra.mxu0 0.0
  %1040 = vmatprep.subr.mxu0 0.0
  %1041 = vmatpush2.msra.mxu0 0.0
  %1042 = vmatprep.subr.mxu0 0.0
  %1043 = vmatpush2.msra.mxu0 0.0
  %1044 = vmatprep.subr.mxu0 0.0
  %1045 = vmatpush2.msra.mxu0 0.0
  %1046 = vmatprep.subr.mxu0 0.0
  %1047 = vmatpush2.msra.mxu0 0.0
  %1048 = vmatprep.subr.mxu0 0.0
  %1049 = vmatpush2.msra.mxu0 0.0
  %1050 = vmatprep.subr.mxu0 0.0
  %1051 = vmatpush2.msra.mxu0 0.0
  %1052 = vmatprep.mubr.f32.mxu0 0.0
  %1053 = vmatmul.mubr.f32.gmra.mxu0 %v848
  %v1054 = vpop.f32.mrf.mxu0
  %v1055 = vadd.f32 %v970, %v1054
  %v1056 = vpop.f32.mrf.mxu0
  %1057 = vmatprep.mubr.f32.mxu0 0.0
  %1058 = vmatmul.mubr.f32.gmra.mxu0 %v838
  %v1059 = vpop.f32.mrf.mxu0
  %v1060 = vadd.f32 %v975, %v1059
  %v1061 = vpop.f32.mrf.mxu0
  %1062 = vmatprep.mubr.f32.mxu0 0.0
  %1063 = vmatmul.mubr.f32.gmra.mxu0 %v849
  %v1064 = vpop.f32.mrf.mxu0
  %v1065 = vadd.f32 %v980, %v1064
  %v1066 = vpop.f32.mrf.mxu0
  %1067 = vmatprep.mubr.f32.mxu0 0.0
  %1068 = vmatmul.mubr.f32.gmra.mxu0 %v841
  %v1069 = vpop.f32.mrf.mxu0
  %v1070 = vadd.f32 %v985, %v1069
  %v1071 = vpop.f32.mrf.mxu0
  %1072 = vdwg.mxu0
  %v1073 = vrot.slane %v848, 2
  %v1074 = vrot.slane %v838, 2
  %v1075 = vsel %vm515, %v1073, %v1074
  %v1076 = vrot.slane %v850, 2
  %v1077 = vsel %vm515, %v1074, %v1076
  %v1078 = vrot.slane %v849, 2
  %v1079 = vrot.slane %v841, 2
  %v1080 = vsel %vm515, %v1078, %v1079
  %v1081 = vrot.slane %v851, 2
  %v1082 = vsel %vm515, %v1079, %v1081
  %s1087 = scalar_lea.vmem %s2, 256
  %v1088 = vld [vmem:[%s1087] sm:$0xff]
  %v1089 = vld [vmem:[%s1087 + $0x8] sm:$0xff]
  %v1090 = vld [vmem:[%s1087 + $0x10] sm:$0xff]
  %v1091 = vld [vmem:[%s1087 + $0x18] sm:$0xff]
  %v1092 = vld [vmem:[%s1087 + $0x20] sm:$0xff]
  %v1093 = vld [vmem:[%s1087 + $0x28] sm:$0xff]
  %v1094 = vld [vmem:[%s1087 + $0x30] sm:$0xff]
  %v1095 = vld [vmem:[%s1087 + $0x38] sm:$0xff]
  %v1096 = vld [vmem:[%s1087 + $0x40] sm:$0xff]
  %v1097 = vld [vmem:[%s1087 + $0x48] sm:$0xff]
  %v1098 = vld [vmem:[%s1087 + $0x50] sm:$0xff]
  %v1099 = vld [vmem:[%s1087 + $0x58] sm:$0xff]
  %v1100 = vld [vmem:[%s1087 + $0x60] sm:$0xff]
  %v1101 = vld [vmem:[%s1087 + $0x68] sm:$0xff]
  %v1102 = vld [vmem:[%s1087 + $0x70] sm:$0xff]
  %v1103 = vld [vmem:[%s1087 + $0x78] sm:$0xff]
  %1104 = vmatprep.subr.mxu0 0.0
  %1105 = vmatpush1.msra.mxu0 %v1103
  %1106 = vmatprep.subr.mxu0 0.0
  %1107 = vmatpush1.msra.mxu0 %v1102
  %1108 = vmatprep.subr.mxu0 0.0
  %1109 = vmatpush1.msra.mxu0 %v1101
  %1110 = vmatprep.subr.mxu0 0.0
  %1111 = vmatpush1.msra.mxu0 %v1100
  %1112 = vmatprep.subr.mxu0 0.0
  %1113 = vmatpush1.msra.mxu0 %v1099
  %1114 = vmatprep.subr.mxu0 0.0
  %1115 = vmatpush1.msra.mxu0 %v1098
  %1116 = vmatprep.subr.mxu0 0.0
  %1117 = vmatpush1.msra.mxu0 %v1097
  %1118 = vmatprep.subr.mxu0 0.0
  %1119 = vmatpush1.msra.mxu0 %v1096
  %1120 = vmatprep.subr.mxu0 0.0
  %1121 = vmatpush1.msra.mxu0 %v1095
  %1122 = vmatprep.subr.mxu0 0.0
  %1123 = vmatpush1.msra.mxu0 %v1094
  %1124 = vmatprep.subr.mxu0 0.0
  %1125 = vmatpush1.msra.mxu0 %v1093
  %1126 = vmatprep.subr.mxu0 0.0
  %1127 = vmatpush1.msra.mxu0 %v1092
  %1128 = vmatprep.subr.mxu0 0.0
  %1129 = vmatpush1.msra.mxu0 %v1091
  %1130 = vmatprep.subr.mxu0 0.0
  %1131 = vmatpush1.msra.mxu0 %v1090
  %1132 = vmatprep.subr.mxu0 0.0
  %1133 = vmatpush1.msra.mxu0 %v1089
  %1134 = vmatprep.subr.mxu0 0.0
  %1135 = vmatpush1.msra.mxu0 %v1088
  %1136 = vmatprep.subr.mxu0 0.0
  %1137 = vmatpush2.msra.mxu0 0.0
  %1138 = vmatprep.subr.mxu0 0.0
  %1139 = vmatpush2.msra.mxu0 0.0
  %1140 = vmatprep.subr.mxu0 0.0
  %1141 = vmatpush2.msra.mxu0 0.0
  %1142 = vmatprep.subr.mxu0 0.0
  %1143 = vmatpush2.msra.mxu0 0.0
  %1144 = vmatprep.subr.mxu0 0.0
  %1145 = vmatpush2.msra.mxu0 0.0
  %1146 = vmatprep.subr.mxu0 0.0
  %1147 = vmatpush2.msra.mxu0 0.0
  %1148 = vmatprep.subr.mxu0 0.0
  %1149 = vmatpush2.msra.mxu0 0.0
  %1150 = vmatprep.subr.mxu0 0.0
  %1151 = vmatpush2.msra.mxu0 0.0
  %1152 = vmatprep.subr.mxu0 0.0
  %1153 = vmatpush2.msra.mxu0 0.0
  %1154 = vmatprep.subr.mxu0 0.0
  %1155 = vmatpush2.msra.mxu0 0.0
  %1156 = vmatprep.subr.mxu0 0.0
  %1157 = vmatpush2.msra.mxu0 0.0
  %1158 = vmatprep.subr.mxu0 0.0
  %1159 = vmatpush2.msra.mxu0 0.0
  %1160 = vmatprep.subr.mxu0 0.0
  %1161 = vmatpush2.msra.mxu0 0.0
  %1162 = vmatprep.subr.mxu0 0.0
  %1163 = vmatpush2.msra.mxu0 0.0
  %1164 = vmatprep.subr.mxu0 0.0
  %1165 = vmatpush2.msra.mxu0 0.0
  %1166 = vmatprep.subr.mxu0 0.0
  %1167 = vmatpush2.msra.mxu0 0.0
  %1168 = vmatprep.mubr.f32.mxu0 0.0
  %1169 = vmatmul.mubr.f32.gmra.mxu0 %v1075
  %v1170 = vpop.f32.mrf.mxu0
  %v1171 = vadd.f32 0.0, %v1170
  %v1172 = vpop.f32.mrf.mxu0
  %1173 = vmatprep.mubr.f32.mxu0 0.0
  %1174 = vmatmul.mubr.f32.gmra.mxu0 %v1077
  %v1175 = vpop.f32.mrf.mxu0
  %v1176 = vadd.f32 0.0, %v1175
  %v1177 = vpop.f32.mrf.mxu0
  %1178 = vmatprep.mubr.f32.mxu0 0.0
  %1179 = vmatmul.mubr.f32.gmra.mxu0 %v1080
  %v1180 = vpop.f32.mrf.mxu0
  %v1181 = vadd.f32 0.0, %v1180
  %v1182 = vpop.f32.mrf.mxu0
  %1183 = vmatprep.mubr.f32.mxu0 0.0
  %1184 = vmatmul.mubr.f32.gmra.mxu0 %v1082
  %v1185 = vpop.f32.mrf.mxu0
  %v1186 = vadd.f32 0.0, %v1185
  %v1187 = vpop.f32.mrf.mxu0
  %1188 = vdwg.mxu0
  %v1189 = vadd.f32 %v1055, %v1171
  %v1190 = vadd.f32 %v1060, %v1176
  %v1191 = vadd.f32 %v1065, %v1181
  %v1192 = vadd.f32 %v1070, %v1186
  %v1193 = vld [vmem:[%s3 + $0x2] sm:$0x1]
  %v1194 = vld [vmem:[%s3 + $0x3] sm:$0x1]
  %v1195 = vadd.f32 %v1189, %v1190
  %v1196 = vadd.f32 %v1195, %v1191
  %v1197 = vadd.f32 %v1196, %v1192
  %v1198 = vrot.slane %v1197, 4
  %v1199 = vadd.f32 %v1197, %v1198
  %v1200 = vrot.slane %v1199, 2
  %v1201 = vadd.f32 %v1199, %v1200
  %v1202 = vrot.slane %v1201, 1
  %v1203 = vadd.f32 %v1201, %v1202
  %1204 = vmatprep.subr.mxu0 0.0
  %1205 = vmatpush1.msra.mxu0 %v287
  %1206 = vmatprep.subr.mxu0 0.0
  %1207 = vmatpush1.msra.mxu0 %v286
  %1208 = vmatprep.subr.mxu0 0.0
  %1209 = vmatpush1.msra.mxu0 %v285
  %1210 = vmatprep.subr.mxu0 0.0
  %1211 = vmatpush1.msra.mxu0 %v284
  %1212 = vmatprep.subr.mxu0 0.0
  %1213 = vmatpush1.msra.mxu0 %v283
  %1214 = vmatprep.subr.mxu0 0.0
  %1215 = vmatpush1.msra.mxu0 %v282
  %1216 = vmatprep.subr.mxu0 0.0
  %1217 = vmatpush1.msra.mxu0 %v281
  %1218 = vmatprep.subr.mxu0 0.0
  %1219 = vmatpush1.msra.mxu0 %v280
  %1220 = vmatprep.subr.mxu0 0.0
  %1221 = vmatpush1.msra.mxu0 %v279
  %1222 = vmatprep.subr.mxu0 0.0
  %1223 = vmatpush1.msra.mxu0 %v278
  %1224 = vmatprep.subr.mxu0 0.0
  %1225 = vmatpush1.msra.mxu0 %v277
  %1226 = vmatprep.subr.mxu0 0.0
  %1227 = vmatpush1.msra.mxu0 %v276
  %1228 = vmatprep.subr.mxu0 0.0
  %1229 = vmatpush1.msra.mxu0 %v275
  %1230 = vmatprep.subr.mxu0 0.0
  %1231 = vmatpush1.msra.mxu0 %v274
  %1232 = vmatprep.subr.mxu0 0.0
  %1233 = vmatpush1.msra.mxu0 %v273
  %1234 = vmatprep.subr.mxu0 0.0
  %1235 = vmatpush1.msra.mxu0 %v272
  %1236 = vmatprep.subr.mxu0 0.0
  %1237 = vmatpush2.msra.mxu0 0.0
  %1238 = vmatprep.subr.mxu0 0.0
  %1239 = vmatpush2.msra.mxu0 0.0
  %1240 = vmatprep.subr.mxu0 0.0
  %1241 = vmatpush2.msra.mxu0 0.0
  %1242 = vmatprep.subr.mxu0 0.0
  %1243 = vmatpush2.msra.mxu0 0.0
  %1244 = vmatprep.subr.mxu0 0.0
  %1245 = vmatpush2.msra.mxu0 0.0
  %1246 = vmatprep.subr.mxu0 0.0
  %1247 = vmatpush2.msra.mxu0 0.0
  %1248 = vmatprep.subr.mxu0 0.0
  %1249 = vmatpush2.msra.mxu0 0.0
  %1250 = vmatprep.subr.mxu0 0.0
  %1251 = vmatpush2.msra.mxu0 0.0
  %1252 = vmatprep.subr.mxu0 0.0
  %1253 = vmatpush2.msra.mxu0 0.0
  %1254 = vmatprep.subr.mxu0 0.0
  %1255 = vmatpush2.msra.mxu0 0.0
  %1256 = vmatprep.subr.mxu0 0.0
  %1257 = vmatpush2.msra.mxu0 0.0
  %1258 = vmatprep.subr.mxu0 0.0
  %1259 = vmatpush2.msra.mxu0 0.0
  %1260 = vmatprep.subr.mxu0 0.0
  %1261 = vmatpush2.msra.mxu0 0.0
  %1262 = vmatprep.subr.mxu0 0.0
  %1263 = vmatpush2.msra.mxu0 0.0
  %1264 = vmatprep.subr.mxu0 0.0
  %1265 = vmatpush2.msra.mxu0 0.0
  %1266 = vmatprep.subr.mxu0 0.0
  %1267 = vmatpush2.msra.mxu0 0.0
  %1268 = vmatprep.mubr.f32.mxu0 0.0
  %1269 = vmatmul.mubr.f32.gmra.mxu0 %v1203
  %v1270 = vpop.f32.mrf.mxu0
  %v1271 = vadd.f32 0.0, %v1270
  %v1272 = vpop.f32.mrf.mxu0
  %1273 = vdwg.mxu0
  %v1274 = vmul.f32 %v1271, 0.001953125
  %v1275 = vlaneseq
  %v1276 = vshrl.u32 %v1275, 7
  %v1277 = vsub.s32 0, %v1276
  %v1278 = vrot.slane %v1274, %v1277
  %v1279 = vsub.f32 %v1189, %v1278
  %v1280 = vsub.f32 %v1190, %v1278
  %v1281 = vsub.f32 %v1191, %v1278
  %v1282 = vsub.f32 %v1192, %v1278
  %v1283 = vmul.f32 %v1279, %v1279
  %v1284 = vmul.f32 %v1280, %v1280
  %v1285 = vmul.f32 %v1281, %v1281
  %v1286 = vmul.f32 %v1282, %v1282
  %v1287 = vadd.f32 %v1283, %v1284
  %v1288 = vadd.f32 %v1287, %v1285
  %v1289 = vadd.f32 %v1288, %v1286
  %v1290 = vrot.slane %v1289, 4
  %v1291 = vadd.f32 %v1289, %v1290
  %v1292 = vrot.slane %v1291, 2
  %v1293 = vadd.f32 %v1291, %v1292
  %v1294 = vrot.slane %v1293, 1
  %v1295 = vadd.f32 %v1293, %v1294
  %1296 = vmatprep.subr.mxu0 0.0
  %1297 = vmatpush1.msra.mxu0 %v287
  %1298 = vmatprep.subr.mxu0 0.0
  %1299 = vmatpush1.msra.mxu0 %v286
  %1300 = vmatprep.subr.mxu0 0.0
  %1301 = vmatpush1.msra.mxu0 %v285
  %1302 = vmatprep.subr.mxu0 0.0
  %1303 = vmatpush1.msra.mxu0 %v284
  %1304 = vmatprep.subr.mxu0 0.0
  %1305 = vmatpush1.msra.mxu0 %v283
  %1306 = vmatprep.subr.mxu0 0.0
  %1307 = vmatpush1.msra.mxu0 %v282
  %1308 = vmatprep.subr.mxu0 0.0
  %1309 = vmatpush1.msra.mxu0 %v281
  %1310 = vmatprep.subr.mxu0 0.0
  %1311 = vmatpush1.msra.mxu0 %v280
  %1312 = vmatprep.subr.mxu0 0.0
  %1313 = vmatpush1.msra.mxu0 %v279
  %1314 = vmatprep.subr.mxu0 0.0
  %1315 = vmatpush1.msra.mxu0 %v278
  %1316 = vmatprep.subr.mxu0 0.0
  %1317 = vmatpush1.msra.mxu0 %v277
  %1318 = vmatprep.subr.mxu0 0.0
  %1319 = vmatpush1.msra.mxu0 %v276
  %1320 = vmatprep.subr.mxu0 0.0
  %1321 = vmatpush1.msra.mxu0 %v275
  %1322 = vmatprep.subr.mxu0 0.0
  %1323 = vmatpush1.msra.mxu0 %v274
  %1324 = vmatprep.subr.mxu0 0.0
  %1325 = vmatpush1.msra.mxu0 %v273
  %1326 = vmatprep.subr.mxu0 0.0
  %1327 = vmatpush1.msra.mxu0 %v272
  %1328 = vmatprep.subr.mxu0 0.0
  %1329 = vmatpush2.msra.mxu0 0.0
  %1330 = vmatprep.subr.mxu0 0.0
  %1331 = vmatpush2.msra.mxu0 0.0
  %1332 = vmatprep.subr.mxu0 0.0
  %1333 = vmatpush2.msra.mxu0 0.0
  %1334 = vmatprep.subr.mxu0 0.0
  %1335 = vmatpush2.msra.mxu0 0.0
  %1336 = vmatprep.subr.mxu0 0.0
  %1337 = vmatpush2.msra.mxu0 0.0
  %1338 = vmatprep.subr.mxu0 0.0
  %1339 = vmatpush2.msra.mxu0 0.0
  %1340 = vmatprep.subr.mxu0 0.0
  %1341 = vmatpush2.msra.mxu0 0.0
  %1342 = vmatprep.subr.mxu0 0.0
  %1343 = vmatpush2.msra.mxu0 0.0
  %1344 = vmatprep.subr.mxu0 0.0
  %1345 = vmatpush2.msra.mxu0 0.0
  %1346 = vmatprep.subr.mxu0 0.0
  %1347 = vmatpush2.msra.mxu0 0.0
  %1348 = vmatprep.subr.mxu0 0.0
  %1349 = vmatpush2.msra.mxu0 0.0
  %1350 = vmatprep.subr.mxu0 0.0
  %1351 = vmatpush2.msra.mxu0 0.0
  %1352 = vmatprep.subr.mxu0 0.0
  %1353 = vmatpush2.msra.mxu0 0.0
  %1354 = vmatprep.subr.mxu0 0.0
  %1355 = vmatpush2.msra.mxu0 0.0
  %1356 = vmatprep.subr.mxu0 0.0
  %1357 = vmatpush2.msra.mxu0 0.0
  %1358 = vmatprep.subr.mxu0 0.0
  %1359 = vmatpush2.msra.mxu0 0.0
  %1360 = vmatprep.mubr.f32.mxu0 0.0
  %1361 = vmatmul.mubr.f32.gmra.mxu0 %v1295
  %v1362 = vpop.f32.mrf.mxu0
  %v1363 = vadd.f32 0.0, %v1362
  %v1364 = vpop.f32.mrf.mxu0
  %1365 = vdwg.mxu0
  %v1366 = vmul.f32 %v1363, 0.001953125
  %v1367 = vadd.f32 %v1366, 1e-05
  %v1368 = vrsqrt.pop %v1367
  %v1369 = vmul.f32 %v1193, %v1368
  %v1370 = vmul.f32 %v1274, %v1369
  %v1371 = vsub.f32 %v1194, %v1370
  %v1372 = vlaneseq
  %v1373 = vshrl.u32 %v1372, 7
  %v1374 = vsub.s32 0, %v1373
  %v1375 = vrot.slane %v1369, %v1374
  %v1376 = vmul.f32 %v1189, %v1375
  %v1377 = vmul.f32 %v1190, %v1375
  %v1378 = vmul.f32 %v1191, %v1375
  %v1379 = vmul.f32 %v1192, %v1375
  %v1380 = vlaneseq
  %v1381 = vshrl.u32 %v1380, 7
  %v1382 = vsub.s32 0, %v1381
  %v1383 = vrot.slane %v1371, %v1382
  %v1384 = vadd.f32 %v1376, %v1383
  %v1385 = vadd.f32 %v1377, %v1383
  %v1386 = vadd.f32 %v1378, %v1383
  %v1387 = vadd.f32 %v1379, %v1383
  %v1388 = vmax.f32 %v1384, 0.0
  %v1389 = vmax.f32 %v1385, 0.0
  %v1390 = vmax.f32 %v1386, 0.0
  %v1391 = vmax.f32 %v1387, 0.0
  %1392 = vst [vmem:[%s4] sm:$0xff] %v1388
  %1393 = vst [vmem:[%s4 + $0x8] sm:$0xff] %v1389
  %1394 = vst [vmem:[%s4 + $0x10] sm:$0xff] %v1390
  %1395 = vst [vmem:[%s4 + $0x18] sm:$0xff] %v1391
  // Predicated region
  $region18: #{unet_block.1} parent=0 // pred_check
    _
  $region19: #{unet_block.1} parent=0 // pred_check_branch
    %1397 = sbr.rel (0) target = $region21
  $region20: #{unet_block.1} parent=0 // pred_region
    _
  $region21: #{unet_block.1} parent=0 // pred_fallthru
    _
  // Predicated region
  $region22: #{unet_block.1} parent=0 // pred_check
    _
  $region23: #{unet_block.1} parent=0 // pred_check_branch
    %1399 = sbr.rel (0) target = $region25
  $region24: #{unet_block.1} parent=0 // pred_region
    _
  $region25: #{unet_block.1} parent=0 // pred_fallthru
    _

</llo_original>
